<compile_context>
chip_gen: v7x
topology: tpu7x:2x2x1
jax: 0.10.0
libtpu: 0.0.40
codegen_flags: <defaults>
</compile_context>

<pallas_src>
import jax
import jax.numpy as jnp
from jax.experimental import pallas as pl
from jax.experimental.pallas import tpu as pltpu

D_IN = 784    # input features (unpadded; 784 is the full last dim)
D_H1 = 256
D_H2 = 64
D_BOT = 128   # bottleneck 10 -> 128 (zero padded, only lane-misaligned dim)
D_OUT = 784   # output features (unpadded)


def _round_up(x, m):
    return ((x + m - 1) // m) * m


def _autoencoder_kernel(
    x_ref,
    w1_ref, b1_ref, w2_ref, b2_ref, w3_ref, b3_ref,
    w4_ref, b4_ref, w5_ref, b5_ref, w6_ref, b6_ref,
    o_ref,
):
    def linear(h_bf16, w_ref, b_ref):
        # bf16 x bf16 MXU matmul with f32 accumulation, f32 bias add.
        return jnp.dot(h_bf16, w_ref[...],
                       preferred_element_type=jnp.float32) + b_ref[...]

    def relu_bf16(h_f32):
        # ReLU, then keep the intermediate in bf16 (halves vld/vst traffic).
        return jnp.maximum(h_f32, 0.0).astype(jnp.bfloat16)

    x = x_ref[...]                                   # (TB, 784) bf16

    # ----- encoder -----
    h = relu_bf16(linear(x, w1_ref, b1_ref))         # 784 -> 256
    h = relu_bf16(linear(h, w2_ref, b2_ref))         # 256 -> 64
    h = relu_bf16(linear(h, w3_ref, b3_ref))         # 64  -> 128 (10 real)

    # ----- decoder -----
    h = relu_bf16(linear(h, w4_ref, b4_ref))         # 128 -> 64
    h = relu_bf16(linear(h, w5_ref, b5_ref))         # 64  -> 256
    h = jax.nn.sigmoid(linear(h, w6_ref, b6_ref))    # 256 -> 784, f32

    o_ref[...] = h.astype(o_ref.dtype)


def prepare_param_operands(params):
    """One-time pad + bf16 cast of weights (hoisted out of the forward path).

    Only the 10-wide bottleneck is padded (to 128): padded W3 columns and B3
    entries are zero -> ReLU(0) = 0 -> multiplied by zero rows of padded W4,
    so results are bit-identical for the real features."""
    (w1, b1), (w2, b2), (w3, b3), (w4, b4), (w5, b5), (w6, b6) = params

    def pad_to(a, shape):
        return jnp.pad(a, [(0, s - d) for s, d in zip(shape, a.shape)])

    weights = [
        w1,                          # (784, 256)
        w2,                          # (256, 64)
        pad_to(w3, (D_H2, D_BOT)),   # (64, 128)
        pad_to(w4, (D_BOT, D_H2)),   # (128, 64)
        w5,                          # (64, 256)
        w6,                          # (256, 784)
    ]
    biases = [b1, b2, pad_to(b3, (D_BOT,)), b4, b5, b6]

    operands = []
    for w, b in zip(weights, biases):
        operands.append(jnp.asarray(w, jnp.bfloat16))
        operands.append(jnp.asarray(b, jnp.float32).reshape(1, -1))
    return operands


@jax.jit
def autoencoder_forward(x_nchw, param_ops):
    """x_nchw: (B, 1, 28, 28) float32, param_ops: prepare_param_operands(...).
    Returns (B, 1, 28, 28) float32."""
    B = x_nchw.shape[0]
    # bf16 input transfer; reshape/cast/pad fuse under jit (no extra HBM pass
    # beyond the unavoidable batch-row padding copy).
    x = x_nchw.reshape(B, D_IN).astype(jnp.bfloat16)

    # Batch tile: cap at 512 rows (~85% of HBM roofline for BlockSpec
    # pipelining) and make the grid >= 2 steps for B > 8 so v7x's two
    # TensorCores both get work (harmless on v5e/v6e).
    if B <= 8:
        TB = _round_up(max(B, 1), 8)
    else:
        TB = min(512, _round_up(pl.cdiv(B, 2), 8))
    B_pad = _round_up(B, TB)
    if B_pad > B:
        x = jnp.pad(x, ((0, B_pad - B), (0, 0)))

    grid = (B_pad // TB,)

    x_spec = pl.BlockSpec((TB, D_IN), lambda i: (i, 0))
    out_spec = pl.BlockSpec((TB, D_OUT), lambda i: (i, 0))
    # Whole-array blocks with constant index_maps: weights/biases stay
    # resident in VMEM across all batch-grid steps.
    param_specs = [pl.BlockSpec(op.shape, lambda i: (0, 0)) for op in param_ops]

    flops = 2 * B_pad * (D_IN * D_H1 + D_H1 * D_H2 + D_H2 * D_BOT
                         + D_BOT * D_H2 + D_H2 * D_H1 + D_H1 * D_OUT)
    weight_bytes = sum(int(op.size) * op.dtype.itemsize for op in param_ops)
    bytes_accessed = int(weight_bytes
                         + B_pad * D_IN * 2      # bf16 input read
                         + B_pad * D_OUT * 4)    # f32 output write

    out_padded = pl.pallas_call(
        _autoencoder_kernel,
        out_shape=jax.ShapeDtypeStruct((B_pad, D_OUT), jnp.float32),
        grid=grid,
        in_specs=[x_spec] + param_specs,
        out_specs=out_spec,
        compiler_params=pltpu.CompilerParams(
            dimension_semantics=("parallel",),
            vmem_limit_bytes=32 * 1024 * 1024),
        cost_estimate=pl.CostEstimate(
            flops=flops,
            transcendentals=B_pad * D_OUT,
            bytes_accessed=bytes_accessed),
    )(x, *param_ops)

    out = out_padded[:B] if B_pad > B else out_padded
    return out.reshape(B, 1, 28, 28)


def init_params(key):
    """Deterministic init mirroring nn.Linear's U(-1/sqrt(fan_in), 1/sqrt(fan_in)).
    Weights stored as (in_features, out_features)."""
    dims = [(784, 256), (256, 64), (64, 10), (10, 64), (64, 256), (256, 784)]
    params = []
    for (fan_in, fan_out) in dims:
        key, kw, kb = jax.random.split(key, 3)
        bound = 1.0 / jnp.sqrt(fan_in)
        w = jax.random.uniform(kw, (fan_in, fan_out), jnp.float32, -bound, bound)
        b = jax.random.uniform(kb, (fan_out,), jnp.float32, -bound, bound)
        params.append((w, b))
    return params


def _reference_forward(x_nchw, params):
    """Pure-JAX f32 reference for correctness checking."""
    B = x_nchw.shape[0]
    h = x_nchw.reshape(B, 784).astype(jnp.float32)
    acts = [jax.nn.relu] * 5 + [jax.nn.sigmoid]
    for (w, b), act in zip(params, acts):
        h = act(h @ w + b)
    return h.reshape(B, 1, 28, 28)


if __name__ == "__main__":
    key = jax.random.PRNGKey(0)
    key, kx = jax.random.split(key)

    B = 2
    x = jax.random.normal(kx, (B, 1, 28, 28), dtype=jnp.float32)

    params = init_params(key)
    param_ops = prepare_param_operands(params)   # one-time pad + bf16 cast

    out = autoencoder_forward(x, param_ops)
    out = jax.block_until_ready(out)

    assert out.shape == (B, 1, 28, 28), out.shape
    assert jnp.all(jnp.isfinite(out))
    # Sigmoid output must lie in (0, 1).
    assert float(out.min()) >= 0.0 and float(out.max()) <= 1.0

    # Compare against an f32 pure-JAX reference (bf16 weights/activations =>
    # small drift).
    ref = _reference_forward(x, params)
    max_err = float(jnp.max(jnp.abs(out - ref)))
    assert max_err < 5e-2, f"max abs error vs f32 reference: {max_err}"

    print("KERNEL_OK")
</pallas_src>

<mosaic_0001>
module attributes {stable_mosaic.version = 11 : i64} {
  func.func @_autoencoder_kernel(%arg0: i32, %arg1: memref<8x784xbf16, #tpu.memory_space<vmem>>, %arg2: memref<784x256xbf16, #tpu.memory_space<vmem>>, %arg3: memref<1x256xf32, #tpu.memory_space<vmem>>, %arg4: memref<256x64xbf16, #tpu.memory_space<vmem>>, %arg5: memref<1x64xf32, #tpu.memory_space<vmem>>, %arg6: memref<64x128xbf16, #tpu.memory_space<vmem>>, %arg7: memref<1x128xf32, #tpu.memory_space<vmem>>, %arg8: memref<128x64xbf16, #tpu.memory_space<vmem>>, %arg9: memref<1x64xf32, #tpu.memory_space<vmem>>, %arg10: memref<64x256xbf16, #tpu.memory_space<vmem>>, %arg11: memref<1x256xf32, #tpu.memory_space<vmem>>, %arg12: memref<256x784xbf16, #tpu.memory_space<vmem>>, %arg13: memref<1x784xf32, #tpu.memory_space<vmem>>, %arg14: memref<8x784xf32, #tpu.memory_space<vmem>>) attributes {dimension_semantics = [#tpu.dimension_semantics<parallel>], iteration_bounds = array<i64: 1>, scalar_prefetch = 0 : i64, scratch_operands = 0 : i64, tpu.core_type = #tpu.core_type<tc>, window_params = [{transform_indices = @transform_0, window_bounds = array<i64: 8, 784>}, {pipeline_mode = #tpu.pipeline_mode<synchronous>, transform_indices = @transform_1, window_bounds = array<i64: 784, 256>}, {pipeline_mode = #tpu.pipeline_mode<synchronous>, transform_indices = @transform_2, window_bounds = array<i64: 1, 256>}, {pipeline_mode = #tpu.pipeline_mode<synchronous>, transform_indices = @transform_3, window_bounds = array<i64: 256, 64>}, {pipeline_mode = #tpu.pipeline_mode<synchronous>, transform_indices = @transform_4, window_bounds = array<i64: 1, 64>}, {pipeline_mode = #tpu.pipeline_mode<synchronous>, transform_indices = @transform_5, window_bounds = array<i64: 64, 128>}, {pipeline_mode = #tpu.pipeline_mode<synchronous>, transform_indices = @transform_6, window_bounds = array<i64: 1, 128>}, {pipeline_mode = #tpu.pipeline_mode<synchronous>, transform_indices = @transform_7, window_bounds = array<i64: 128, 64>}, {pipeline_mode = #tpu.pipeline_mode<synchronous>, transform_indices = @transform_8, window_bounds = array<i64: 1, 64>}, {pipeline_mode = #tpu.pipeline_mode<synchronous>, transform_indices = @transform_9, window_bounds = array<i64: 64, 256>}, {pipeline_mode = #tpu.pipeline_mode<synchronous>, transform_indices = @transform_10, window_bounds = array<i64: 1, 256>}, {pipeline_mode = #tpu.pipeline_mode<synchronous>, transform_indices = @transform_11, window_bounds = array<i64: 256, 784>}, {pipeline_mode = #tpu.pipeline_mode<synchronous>, transform_indices = @transform_12, window_bounds = array<i64: 1, 784>}, {transform_indices = @transform_13, window_bounds = array<i64: 8, 784>}]} {
    %c0 = arith.constant 0 : index
    %c0_0 = arith.constant 0 : index
    %0 = vector.load %arg1[%c0, %c0_0] : memref<8x784xbf16, #tpu.memory_space<vmem>>, vector<8x784xbf16>
    %c0_1 = arith.constant 0 : index
    %c0_2 = arith.constant 0 : index
    %1 = vector.load %arg2[%c0_1, %c0_2] : memref<784x256xbf16, #tpu.memory_space<vmem>>, vector<784x256xbf16>
    %cst = arith.constant dense<0.000000e+00> : vector<8x256xf32>
    %2 = tpu.matmul %0, %1, %cst {dimension_numbers = #tpu.dot_dimension_numbers<[1], [0], [0], [1], [0, 0, 1, 1], [], []>} : vector<8x784xbf16>, vector<784x256xbf16>, vector<8x256xf32> -> vector<8x256xf32>
    %c0_3 = arith.constant 0 : index
    %c0_4 = arith.constant 0 : index
    %3 = vector.load %arg3[%c0_3, %c0_4] : memref<1x256xf32, #tpu.memory_space<vmem>>, vector<1x256xf32>
    %4 = vector.broadcast %3 : vector<1x256xf32> to vector<8x256xf32>
    %5 = arith.addf %2, %4 : vector<8x256xf32>
    %cst_5 = arith.constant 0.000000e+00 : f32
    %6 = vector.broadcast %cst_5 : f32 to vector<8x256xf32>
    %7 = arith.maximumf %5, %6 : vector<8x256xf32>
    %8 = arith.truncf %7 : vector<8x256xf32> to vector<8x256xbf16>
    %c0_6 = arith.constant 0 : index
    %c0_7 = arith.constant 0 : index
    %9 = vector.load %arg4[%c0_6, %c0_7] : memref<256x64xbf16, #tpu.memory_space<vmem>>, vector<256x64xbf16>
    %cst_8 = arith.constant dense<0.000000e+00> : vector<8x64xf32>
    %10 = tpu.matmul %8, %9, %cst_8 {dimension_numbers = #tpu.dot_dimension_numbers<[1], [0], [0], [1], [0, 0, 1, 1], [], []>} : vector<8x256xbf16>, vector<256x64xbf16>, vector<8x64xf32> -> vector<8x64xf32>
    %c0_9 = arith.constant 0 : index
    %c0_10 = arith.constant 0 : index
    %11 = vector.load %arg5[%c0_9, %c0_10] : memref<1x64xf32, #tpu.memory_space<vmem>>, vector<1x64xf32>
    %12 = vector.broadcast %11 : vector<1x64xf32> to vector<8x64xf32>
    %13 = arith.addf %10, %12 : vector<8x64xf32>
    %cst_11 = arith.constant 0.000000e+00 : f32
    %14 = vector.broadcast %cst_11 : f32 to vector<8x64xf32>
    %15 = arith.maximumf %13, %14 : vector<8x64xf32>
    %16 = arith.truncf %15 : vector<8x64xf32> to vector<8x64xbf16>
    %c0_12 = arith.constant 0 : index
    %c0_13 = arith.constant 0 : index
    %17 = vector.load %arg6[%c0_12, %c0_13] : memref<64x128xbf16, #tpu.memory_space<vmem>>, vector<64x128xbf16>
    %cst_14 = arith.constant dense<0.000000e+00> : vector<8x128xf32>
    %18 = tpu.matmul %16, %17, %cst_14 {dimension_numbers = #tpu.dot_dimension_numbers<[1], [0], [0], [1], [0, 0, 1, 1], [], []>} : vector<8x64xbf16>, vector<64x128xbf16>, vector<8x128xf32> -> vector<8x128xf32>
    %c0_15 = arith.constant 0 : index
    %c0_16 = arith.constant 0 : index
    %19 = vector.load %arg7[%c0_15, %c0_16] : memref<1x128xf32, #tpu.memory_space<vmem>>, vector<1x128xf32>
    %20 = vector.broadcast %19 : vector<1x128xf32> to vector<8x128xf32>
    %21 = arith.addf %18, %20 : vector<8x128xf32>
    %cst_17 = arith.constant 0.000000e+00 : f32
    %22 = vector.broadcast %cst_17 : f32 to vector<8x128xf32>
    %23 = arith.maximumf %21, %22 : vector<8x128xf32>
    %24 = arith.truncf %23 : vector<8x128xf32> to vector<8x128xbf16>
    %c0_18 = arith.constant 0 : index
    %c0_19 = arith.constant 0 : index
    %25 = vector.load %arg8[%c0_18, %c0_19] : memref<128x64xbf16, #tpu.memory_space<vmem>>, vector<128x64xbf16>
    %cst_20 = arith.constant dense<0.000000e+00> : vector<8x64xf32>
    %26 = tpu.matmul %24, %25, %cst_20 {dimension_numbers = #tpu.dot_dimension_numbers<[1], [0], [0], [1], [0, 0, 1, 1], [], []>} : vector<8x128xbf16>, vector<128x64xbf16>, vector<8x64xf32> -> vector<8x64xf32>
    %c0_21 = arith.constant 0 : index
    %c0_22 = arith.constant 0 : index
    %27 = vector.load %arg9[%c0_21, %c0_22] : memref<1x64xf32, #tpu.memory_space<vmem>>, vector<1x64xf32>
    %28 = vector.broadcast %27 : vector<1x64xf32> to vector<8x64xf32>
    %29 = arith.addf %26, %28 : vector<8x64xf32>
    %cst_23 = arith.constant 0.000000e+00 : f32
    %30 = vector.broadcast %cst_23 : f32 to vector<8x64xf32>
    %31 = arith.maximumf %29, %30 : vector<8x64xf32>
    %32 = arith.truncf %31 : vector<8x64xf32> to vector<8x64xbf16>
    %c0_24 = arith.constant 0 : index
    %c0_25 = arith.constant 0 : index
    %33 = vector.load %arg10[%c0_24, %c0_25] : memref<64x256xbf16, #tpu.memory_space<vmem>>, vector<64x256xbf16>
    %cst_26 = arith.constant dense<0.000000e+00> : vector<8x256xf32>
    %34 = tpu.matmul %32, %33, %cst_26 {dimension_numbers = #tpu.dot_dimension_numbers<[1], [0], [0], [1], [0, 0, 1, 1], [], []>} : vector<8x64xbf16>, vector<64x256xbf16>, vector<8x256xf32> -> vector<8x256xf32>
    %c0_27 = arith.constant 0 : index
    %c0_28 = arith.constant 0 : index
    %35 = vector.load %arg11[%c0_27, %c0_28] : memref<1x256xf32, #tpu.memory_space<vmem>>, vector<1x256xf32>
    %36 = vector.broadcast %35 : vector<1x256xf32> to vector<8x256xf32>
    %37 = arith.addf %34, %36 : vector<8x256xf32>
    %cst_29 = arith.constant 0.000000e+00 : f32
    %38 = vector.broadcast %cst_29 : f32 to vector<8x256xf32>
    %39 = arith.maximumf %37, %38 : vector<8x256xf32>
    %40 = arith.truncf %39 : vector<8x256xf32> to vector<8x256xbf16>
    %c0_30 = arith.constant 0 : index
    %c0_31 = arith.constant 0 : index
    %41 = vector.load %arg12[%c0_30, %c0_31] : memref<256x784xbf16, #tpu.memory_space<vmem>>, vector<256x784xbf16>
    %cst_32 = arith.constant dense<0.000000e+00> : vector<8x784xf32>
    %42 = tpu.matmul %40, %41, %cst_32 {dimension_numbers = #tpu.dot_dimension_numbers<[1], [0], [0], [1], [0, 0, 1, 1], [], []>} : vector<8x256xbf16>, vector<256x784xbf16>, vector<8x784xf32> -> vector<8x784xf32>
    %c0_33 = arith.constant 0 : index
    %c0_34 = arith.constant 0 : index
    %43 = vector.load %arg13[%c0_33, %c0_34] : memref<1x784xf32, #tpu.memory_space<vmem>>, vector<1x784xf32>
    %44 = vector.broadcast %43 : vector<1x784xf32> to vector<8x784xf32>
    %45 = arith.addf %42, %44 : vector<8x784xf32>
    %46 = arith.negf %45 : vector<8x784xf32>
    %47 = math.exp %46 : vector<8x784xf32>
    %cst_35 = arith.constant 1.000000e+00 : f32
    %48 = vector.broadcast %cst_35 : f32 to vector<8x784xf32>
    %49 = arith.addf %48, %47 : vector<8x784xf32>
    %50 = arith.divf %48, %49 : vector<8x784xf32>
    %c0_36 = arith.constant 0 : index
    %c0_37 = arith.constant 0 : index
    %51 = vector.load %arg14[%c0_36, %c0_37] : memref<8x784xf32, #tpu.memory_space<vmem>>, vector<8x784xf32>
    tpu.vector_store %arg14[%c0_36, %c0_37], %50 {strides = array<i32>} : memref<8x784xf32, #tpu.memory_space<vmem>>, vector<8x784xf32>,
    return
  }
  func.func @transform_0(%arg0: i32) -> (i32, i32) {
    %c0_i32 = arith.constant 0 : i32
    %c0_i32_0 = arith.constant 0 : i32
    return %arg0, %c0_i32 : i32, i32
  }
  func.func @transform_1(%arg0: i32) -> (i32, i32) {
    %c0_i32 = arith.constant 0 : i32
    %c0_i32_0 = arith.constant 0 : i32
    %c0_i32_1 = arith.constant 0 : i32
    return %c0_i32, %c0_i32_0 : i32, i32
  }
  func.func @transform_2(%arg0: i32) -> (i32, i32) {
    %c0_i32 = arith.constant 0 : i32
    %c0_i32_0 = arith.constant 0 : i32
    %c0_i32_1 = arith.constant 0 : i32
    return %c0_i32, %c0_i32_0 : i32, i32
  }
  func.func @transform_3(%arg0: i32) -> (i32, i32) {
    %c0_i32 = arith.constant 0 : i32
    %c0_i32_0 = arith.constant 0 : i32
    %c0_i32_1 = arith.constant 0 : i32
    return %c0_i32, %c0_i32_0 : i32, i32
  }
  func.func @transform_4(%arg0: i32) -> (i32, i32) {
    %c0_i32 = arith.constant 0 : i32
    %c0_i32_0 = arith.constant 0 : i32
    %c0_i32_1 = arith.constant 0 : i32
    return %c0_i32, %c0_i32_0 : i32, i32
  }
  func.func @transform_5(%arg0: i32) -> (i32, i32) {
    %c0_i32 = arith.constant 0 : i32
    %c0_i32_0 = arith.constant 0 : i32
    %c0_i32_1 = arith.constant 0 : i32
    return %c0_i32, %c0_i32_0 : i32, i32
  }
  func.func @transform_6(%arg0: i32) -> (i32, i32) {
    %c0_i32 = arith.constant 0 : i32
    %c0_i32_0 = arith.constant 0 : i32
    %c0_i32_1 = arith.constant 0 : i32
    return %c0_i32, %c0_i32_0 : i32, i32
  }
  func.func @transform_7(%arg0: i32) -> (i32, i32) {
    %c0_i32 = arith.constant 0 : i32
    %c0_i32_0 = arith.constant 0 : i32
    %c0_i32_1 = arith.constant 0 : i32
    return %c0_i32, %c0_i32_0 : i32, i32
  }
  func.func @transform_8(%arg0: i32) -> (i32, i32) {
    %c0_i32 = arith.constant 0 : i32
    %c0_i32_0 = arith.constant 0 : i32
    %c0_i32_1 = arith.constant 0 : i32
    return %c0_i32, %c0_i32_0 : i32, i32
  }
  func.func @transform_9(%arg0: i32) -> (i32, i32) {
    %c0_i32 = arith.constant 0 : i32
    %c0_i32_0 = arith.constant 0 : i32
    %c0_i32_1 = arith.constant 0 : i32
    return %c0_i32, %c0_i32_0 : i32, i32
  }
  func.func @transform_10(%arg0: i32) -> (i32, i32) {
    %c0_i32 = arith.constant 0 : i32
    %c0_i32_0 = arith.constant 0 : i32
    %c0_i32_1 = arith.constant 0 : i32
    return %c0_i32, %c0_i32_0 : i32, i32
  }
  func.func @transform_11(%arg0: i32) -> (i32, i32) {
    %c0_i32 = arith.constant 0 : i32
    %c0_i32_0 = arith.constant 0 : i32
    %c0_i32_1 = arith.constant 0 : i32
    return %c0_i32, %c0_i32_0 : i32, i32
  }
  func.func @transform_12(%arg0: i32) -> (i32, i32) {
    %c0_i32 = arith.constant 0 : i32
    %c0_i32_0 = arith.constant 0 : i32
    %c0_i32_1 = arith.constant 0 : i32
    return %c0_i32, %c0_i32_0 : i32, i32
  }
  func.func @transform_13(%arg0: i32) -> (i32, i32) {
    %c0_i32 = arith.constant 0 : i32
    %c0_i32_0 = arith.constant 0 : i32
    return %arg0, %c0_i32 : i32, i32
  }
}

</mosaic_0001>

<llo_original>
// kernel: autoencoder_forward.1
$region0: #{autoencoder_forward.1}
  #allocation0 [shape = 'u32[]', space=smem, size = 0x4, offset = 0x4, fixed_abs, tag = 'smem constant byte address 0x4 - core index']
  #allocation1 [shape = 'u32[144,128]{1,0:T(1,128)}', space=vmem, size = 0x12000, scoped, tag = 'internal scratch']
  %s0 = inlined_call_operand.vmem [shape: bf16[8,784], index: 0, kind: input, shape index: {}]
  %s1 = inlined_call_operand.vmem [shape: bf16[784,256], index: 1, kind: input, shape index: {}]
  %s2 = inlined_call_operand.vmem [shape: f32[1,256], index: 2, kind: input, shape index: {}]
  %s3 = inlined_call_operand.vmem [shape: bf16[256,64], index: 3, kind: input, shape index: {}]
  %s4 = inlined_call_operand.vmem [shape: f32[1,64], index: 4, kind: input, shape index: {}]
  %s5 = inlined_call_operand.vmem [shape: bf16[64,128], index: 5, kind: input, shape index: {}]
  %s6 = inlined_call_operand.vmem [shape: f32[1,128], index: 6, kind: input, shape index: {}]
  %s7 = inlined_call_operand.vmem [shape: bf16[128,64], index: 7, kind: input, shape index: {}]
  %s8 = inlined_call_operand.vmem [shape: f32[1,64], index: 8, kind: input, shape index: {}]
  %s9 = inlined_call_operand.vmem [shape: bf16[64,256], index: 9, kind: input, shape index: {}]
  %s10 = inlined_call_operand.vmem [shape: f32[1,256], index: 10, kind: input, shape index: {}]
  %s11 = inlined_call_operand.vmem [shape: bf16[256,784], index: 11, kind: input, shape index: {}]
  %s12 = inlined_call_operand.vmem [shape: f32[1,784], index: 12, kind: input, shape index: {}]
  %s13 = inlined_call_operand.vmem [shape: f32[8,784], index: 13, kind: output, shape index: {}]
  %s14 = sld [smem:[#allocation0]]
  $region62: #{autoencoder_forward.1} parent=0
    _
  %s16 = ssub.s32 1, %s14
  %s17 = scalar_select 0, %s16, %s14
  // Predicated region
  $region2: #{autoencoder_forward.1} parent=0 // pred_check
    _
  $region3: #{autoencoder_forward.1} parent=0 // pred_check_branch
    %19 = sbr.rel (0) target = $region5
  $region4: #{autoencoder_forward.1} parent=0 // pred_region
    _
  $region5: #{autoencoder_forward.1} parent=0 // pred_fallthru
    _
  // Predicated region
  $region6: #{autoencoder_forward.1} parent=0 // pred_check
    _
  $region7: #{autoencoder_forward.1} parent=0 // pred_check_branch
    %21 = sbr.rel (0) target = $region9
  $region8: #{autoencoder_forward.1} parent=0 // pred_region
    _
  $region9: #{autoencoder_forward.1} parent=0 // pred_fallthru
    _
  // Predicated region
  $region10: #{autoencoder_forward.1} parent=0 // pred_check
    _
  $region11: #{autoencoder_forward.1} parent=0 // pred_check_branch
    %23 = sbr.rel (0) target = $region13
  $region12: #{autoencoder_forward.1} parent=0 // pred_region
    _
  $region13: #{autoencoder_forward.1} parent=0 // pred_fallthru
    _
  // Predicated region
  $region14: #{autoencoder_forward.1} parent=0 // pred_check
    _
  $region15: #{autoencoder_forward.1} parent=0 // pred_check_branch
    %25 = sbr.rel (0) target = $region17
  $region16: #{autoencoder_forward.1} parent=0 // pred_region
    _
  $region17: #{autoencoder_forward.1} parent=0 // pred_fallthru
    _
  // Predicated region
  $region18: #{autoencoder_forward.1} parent=0 // pred_check
    _
  $region19: #{autoencoder_forward.1} parent=0 // pred_check_branch
    %27 = sbr.rel (0) target = $region21
  $region20: #{autoencoder_forward.1} parent=0 // pred_region
    _
  $region21: #{autoencoder_forward.1} parent=0 // pred_fallthru
    _
  // Predicated region
  $region22: #{autoencoder_forward.1} parent=0 // pred_check
    _
  $region23: #{autoencoder_forward.1} parent=0 // pred_check_branch
    %29 = sbr.rel (0) target = $region25
  $region24: #{autoencoder_forward.1} parent=0 // pred_region
    _
  $region25: #{autoencoder_forward.1} parent=0 // pred_fallthru
    _
  // Predicated region
  $region26: #{autoencoder_forward.1} parent=0 // pred_check
    _
  $region27: #{autoencoder_forward.1} parent=0 // pred_check_branch
    %31 = sbr.rel (0) target = $region29
  $region28: #{autoencoder_forward.1} parent=0 // pred_region
    _
  $region29: #{autoencoder_forward.1} parent=0 // pred_fallthru
    _
  // Predicated region
  $region30: #{autoencoder_forward.1} parent=0 // pred_check
    _
  $region31: #{autoencoder_forward.1} parent=0 // pred_check_branch
    %33 = sbr.rel (0) target = $region33
  $region32: #{autoencoder_forward.1} parent=0 // pred_region
    _
  $region33: #{autoencoder_forward.1} parent=0 // pred_fallthru
    _
  // Predicated region
  $region34: #{autoencoder_forward.1} parent=0 // pred_check
    _
  $region35: #{autoencoder_forward.1} parent=0 // pred_check_branch
    %35 = sbr.rel (0) target = $region37
  $region36: #{autoencoder_forward.1} parent=0 // pred_region
    _
  $region37: #{autoencoder_forward.1} parent=0 // pred_fallthru
    _
  // Predicated region
  $region38: #{autoencoder_forward.1} parent=0 // pred_check
    _
  $region39: #{autoencoder_forward.1} parent=0 // pred_check_branch
    %37 = sbr.rel (0) target = $region41
  $region40: #{autoencoder_forward.1} parent=0 // pred_region
    _
  $region41: #{autoencoder_forward.1} parent=0 // pred_fallthru
    _
  // Predicated region
  $region42: #{autoencoder_forward.1} parent=0 // pred_check
    _
  $region43: #{autoencoder_forward.1} parent=0 // pred_check_branch
    %39 = sbr.rel (0) target = $region45
  $region44: #{autoencoder_forward.1} parent=0 // pred_region
    _
  $region45: #{autoencoder_forward.1} parent=0 // pred_fallthru
    _
  // Predicated region
  $region46: #{autoencoder_forward.1} parent=0 // pred_check
    _
  $region47: #{autoencoder_forward.1} parent=0 // pred_check_branch
    %41 = sbr.rel (0) target = $region49
  $region48: #{autoencoder_forward.1} parent=0 // pred_region
    _
  $region49: #{autoencoder_forward.1} parent=0 // pred_fallthru
    _
  // Predicated region
  $region50: #{autoencoder_forward.1} parent=0 // pred_check
    _
  $region51: #{autoencoder_forward.1} parent=0 // pred_check_branch
    %43 = sbr.rel (0) target = $region53
  $region52: #{autoencoder_forward.1} parent=0 // pred_region
    _
  $region53: #{autoencoder_forward.1} parent=0 // pred_fallthru
    _
  %v45 = vld [vmem:[%s0] sm:$0xff]
  %v46 = vld [vmem:[%s0 + $0x8] sm:$0xff]
  %v47 = vld [vmem:[%s0 + $0x10] sm:$0xff]
  %v48 = vld [vmem:[%s0 + $0x18] sm:$0xf]
  %v49 = vld [vmem:[%s1] sm:$0xff]
  %v50 = vld [vmem:[%s1 + $0x8] sm:$0xff]
  %v51 = vld [vmem:[%s1 + $0x10] sm:$0xff]
  %v52 = vld [vmem:[%s1 + $0x18] sm:$0xff]
  %v53 = vld [vmem:[%s1 + $0x20] sm:$0xff]
  %v54 = vld [vmem:[%s1 + $0x28] sm:$0xff]
  %v55 = vld [vmem:[%s1 + $0x30] sm:$0xff]
  %v56 = vld [vmem:[%s1 + $0x38] sm:$0xff]
  %v57 = vld [vmem:[%s1 + $0x40] sm:$0xff]
  %v58 = vld [vmem:[%s1 + $0x48] sm:$0xff]
  %v59 = vld [vmem:[%s1 + $0x50] sm:$0xff]
  %v60 = vld [vmem:[%s1 + $0x58] sm:$0xff]
  %v61 = vld [vmem:[%s1 + $0x60] sm:$0xff]
  %v62 = vld [vmem:[%s1 + $0x68] sm:$0xff]
  %v63 = vld [vmem:[%s1 + $0x70] sm:$0xff]
  %v64 = vld [vmem:[%s1 + $0x78] sm:$0xff]
  %v65 = vld [vmem:[%s1 + $0x80] sm:$0xff]
  %v66 = vld [vmem:[%s1 + $0x88] sm:$0xff]
  %v67 = vld [vmem:[%s1 + $0x90] sm:$0xff]
  %v68 = vld [vmem:[%s1 + $0x98] sm:$0xff]
  %v69 = vld [vmem:[%s1 + $0xa0] sm:$0xff]
  %v70 = vld [vmem:[%s1 + $0xa8] sm:$0xff]
  %v71 = vld [vmem:[%s1 + $0xb0] sm:$0xff]
  %v72 = vld [vmem:[%s1 + $0xb8] sm:$0xff]
  %v73 = vld [vmem:[%s1 + $0xc0] sm:$0xff]
  %v74 = vld [vmem:[%s1 + $0xc8] sm:$0xff]
  %v75 = vld [vmem:[%s1 + $0xd0] sm:$0xff]
  %v76 = vld [vmem:[%s1 + $0xd8] sm:$0xff]
  %v77 = vld [vmem:[%s1 + $0xe0] sm:$0xff]
  %v78 = vld [vmem:[%s1 + $0xe8] sm:$0xff]
  %v79 = vld [vmem:[%s1 + $0xf0] sm:$0xff]
  %v80 = vld [vmem:[%s1 + $0xf8] sm:$0xff]
  %v81 = vld [vmem:[%s1 + $0x100] sm:$0xff]
  %v82 = vld [vmem:[%s1 + $0x108] sm:$0xff]
  %v83 = vld [vmem:[%s1 + $0x110] sm:$0xff]
  %v84 = vld [vmem:[%s1 + $0x118] sm:$0xff]
  %v85 = vld [vmem:[%s1 + $0x120] sm:$0xff]
  %v86 = vld [vmem:[%s1 + $0x128] sm:$0xff]
  %v87 = vld [vmem:[%s1 + $0x130] sm:$0xff]
  %v88 = vld [vmem:[%s1 + $0x138] sm:$0xff]
  %v89 = vld [vmem:[%s1 + $0x140] sm:$0xff]
  %v90 = vld [vmem:[%s1 + $0x148] sm:$0xff]
  %v91 = vld [vmem:[%s1 + $0x150] sm:$0xff]
  %v92 = vld [vmem:[%s1 + $0x158] sm:$0xff]
  %v93 = vld [vmem:[%s1 + $0x160] sm:$0xff]
  %v94 = vld [vmem:[%s1 + $0x168] sm:$0xff]
  %v95 = vld [vmem:[%s1 + $0x170] sm:$0xff]
  %v96 = vld [vmem:[%s1 + $0x178] sm:$0xff]
  %v97 = vld [vmem:[%s1 + $0x180] sm:$0xff]
  %v98 = vld [vmem:[%s1 + $0x188] sm:$0xff]
  %v99 = vld [vmem:[%s1 + $0x190] sm:$0xff]
  %v100 = vld [vmem:[%s1 + $0x198] sm:$0xff]
  %v101 = vld [vmem:[%s1 + $0x1a0] sm:$0xff]
  %v102 = vld [vmem:[%s1 + $0x1a8] sm:$0xff]
  %v103 = vld [vmem:[%s1 + $0x1b0] sm:$0xff]
  %v104 = vld [vmem:[%s1 + $0x1b8] sm:$0xff]
  %v105 = vld [vmem:[%s1 + $0x1c0] sm:$0xff]
  %v106 = vld [vmem:[%s1 + $0x1c8] sm:$0xff]
  %v107 = vld [vmem:[%s1 + $0x1d0] sm:$0xff]
  %v108 = vld [vmem:[%s1 + $0x1d8] sm:$0xff]
  %v109 = vld [vmem:[%s1 + $0x1e0] sm:$0xff]
  %v110 = vld [vmem:[%s1 + $0x1e8] sm:$0xff]
  %v111 = vld [vmem:[%s1 + $0x1f0] sm:$0xff]
  %v112 = vld [vmem:[%s1 + $0x1f8] sm:$0xff]
  %v113 = vld [vmem:[%s1 + $0x200] sm:$0xff]
  %v114 = vld [vmem:[%s1 + $0x208] sm:$0xff]
  %v115 = vld [vmem:[%s1 + $0x210] sm:$0xff]
  %v116 = vld [vmem:[%s1 + $0x218] sm:$0xff]
  %v117 = vld [vmem:[%s1 + $0x220] sm:$0xff]
  %v118 = vld [vmem:[%s1 + $0x228] sm:$0xff]
  %v119 = vld [vmem:[%s1 + $0x230] sm:$0xff]
  %v120 = vld [vmem:[%s1 + $0x238] sm:$0xff]
  %v121 = vld [vmem:[%s1 + $0x240] sm:$0xff]
  %v122 = vld [vmem:[%s1 + $0x248] sm:$0xff]
  %v123 = vld [vmem:[%s1 + $0x250] sm:$0xff]
  %v124 = vld [vmem:[%s1 + $0x258] sm:$0xff]
  %v125 = vld [vmem:[%s1 + $0x260] sm:$0xff]
  %v126 = vld [vmem:[%s1 + $0x268] sm:$0xff]
  %v127 = vld [vmem:[%s1 + $0x270] sm:$0xff]
  %v128 = vld [vmem:[%s1 + $0x278] sm:$0xff]
  %v129 = vld [vmem:[%s1 + $0x280] sm:$0xff]
  %v130 = vld [vmem:[%s1 + $0x288] sm:$0xff]
  %v131 = vld [vmem:[%s1 + $0x290] sm:$0xff]
  %v132 = vld [vmem:[%s1 + $0x298] sm:$0xff]
  %v133 = vld [vmem:[%s1 + $0x2a0] sm:$0xff]
  %v134 = vld [vmem:[%s1 + $0x2a8] sm:$0xff]
  %v135 = vld [vmem:[%s1 + $0x2b0] sm:$0xff]
  %v136 = vld [vmem:[%s1 + $0x2b8] sm:$0xff]
  %v137 = vld [vmem:[%s1 + $0x2c0] sm:$0xff]
  %v138 = vld [vmem:[%s1 + $0x2c8] sm:$0xff]
  %v139 = vld [vmem:[%s1 + $0x2d0] sm:$0xff]
  %v140 = vld [vmem:[%s1 + $0x2d8] sm:$0xff]
  %v141 = vld [vmem:[%s1 + $0x2e0] sm:$0xff]
  %v142 = vld [vmem:[%s1 + $0x2e8] sm:$0xff]
  %v143 = vld [vmem:[%s1 + $0x2f0] sm:$0xff]
  %v144 = vld [vmem:[%s1 + $0x2f8] sm:$0xff]
  %v145 = vld [vmem:[%s1 + $0x300] sm:$0xff]
  %v146 = vld [vmem:[%s1 + $0x308] sm:$0xff]
  %v147 = vld [vmem:[%s2] sm:$0x3]
  %v149 = vlaneseq
  %v150 = vshrl.u32 %v149, 7
  %v151 = vsub.s32 0, %v150
  %v152 = vrot.slane %v147, %v151
  %v153 = vlaneseq
  %v154 = vshrl.u32 %v153, 7
  %v155 = vsub.s32 1, %v154
  %v156 = vrot.slane %v147, %v155
  %v163 = vunpack.c.l.b16 %v45
  %v164 = vunpack.c.h.b16 %v45
  %v165 = vunpack.c.l.b16 %v46
  %v166 = vunpack.c.h.b16 %v46
  %v167 = vunpack.c.l.b16 %v47
  %v168 = vunpack.c.h.b16 %v47
  %v169 = vunpack.c.l.b16 %v48
  %v170 = vpack.c.b16 %v163, %v163
  %v171 = vpack.c.b16 %v164, %v164
  %v172 = vpack.c.b16 %v165, %v165
  %v173 = vpack.c.b16 %v166, %v166
  %v174 = vpack.c.b16 %v167, %v167
  %v175 = vpack.c.b16 %v168, %v168
  %v176 = vpack.c.b16 %v169, %v169
  %v281 = vunpack.c.l.b16 %v49
  %v282 = vunpack.c.h.b16 %v49
  %v283 = vunpack.c.l.b16 %v50
  %v284 = vunpack.c.h.b16 %v50
  %v285 = vunpack.c.l.b16 %v51
  %v286 = vunpack.c.h.b16 %v51
  %v287 = vunpack.c.l.b16 %v52
  %v288 = vunpack.c.h.b16 %v52
  %v289 = vunpack.c.l.b16 %v53
  %v290 = vunpack.c.h.b16 %v53
  %v291 = vunpack.c.l.b16 %v54
  %v292 = vunpack.c.h.b16 %v54
  %v293 = vunpack.c.l.b16 %v55
  %v294 = vunpack.c.h.b16 %v55
  %v295 = vunpack.c.l.b16 %v56
  %v296 = vunpack.c.h.b16 %v56
  %v297 = vunpack.c.l.b16 %v57
  %v298 = vunpack.c.h.b16 %v57
  %v299 = vunpack.c.l.b16 %v58
  %v300 = vunpack.c.h.b16 %v58
  %v301 = vunpack.c.l.b16 %v59
  %v302 = vunpack.c.h.b16 %v59
  %v303 = vunpack.c.l.b16 %v60
  %v304 = vunpack.c.h.b16 %v60
  %v305 = vunpack.c.l.b16 %v61
  %v306 = vunpack.c.h.b16 %v61
  %v307 = vunpack.c.l.b16 %v62
  %v308 = vunpack.c.h.b16 %v62
  %v309 = vunpack.c.l.b16 %v63
  %v310 = vunpack.c.h.b16 %v63
  %v311 = vunpack.c.l.b16 %v64
  %v312 = vunpack.c.h.b16 %v64
  %v313 = vunpack.c.l.b16 %v65
  %v314 = vunpack.c.h.b16 %v65
  %v315 = vunpack.c.l.b16 %v66
  %v316 = vunpack.c.h.b16 %v66
  %v317 = vunpack.c.l.b16 %v67
  %v318 = vunpack.c.h.b16 %v67
  %v319 = vunpack.c.l.b16 %v68
  %v320 = vunpack.c.h.b16 %v68
  %v321 = vunpack.c.l.b16 %v69
  %v322 = vunpack.c.h.b16 %v69
  %v323 = vunpack.c.l.b16 %v70
  %v324 = vunpack.c.h.b16 %v70
  %v325 = vunpack.c.l.b16 %v71
  %v326 = vunpack.c.h.b16 %v71
  %v327 = vunpack.c.l.b16 %v72
  %v328 = vunpack.c.h.b16 %v72
  %v329 = vunpack.c.l.b16 %v73
  %v330 = vunpack.c.h.b16 %v73
  %v331 = vunpack.c.l.b16 %v74
  %v332 = vunpack.c.h.b16 %v74
  %v333 = vunpack.c.l.b16 %v75
  %v334 = vunpack.c.h.b16 %v75
  %v335 = vunpack.c.l.b16 %v76
  %v336 = vunpack.c.h.b16 %v76
  %v337 = vunpack.c.l.b16 %v77
  %v338 = vunpack.c.h.b16 %v77
  %v339 = vunpack.c.l.b16 %v78
  %v340 = vunpack.c.h.b16 %v78
  %v341 = vunpack.c.l.b16 %v79
  %v342 = vunpack.c.h.b16 %v79
  %v343 = vunpack.c.l.b16 %v80
  %v344 = vunpack.c.h.b16 %v80
  %v345 = vunpack.c.l.b16 %v81
  %v346 = vunpack.c.h.b16 %v81
  %v347 = vunpack.c.l.b16 %v82
  %v348 = vunpack.c.h.b16 %v82
  %v349 = vunpack.c.l.b16 %v83
  %v350 = vunpack.c.h.b16 %v83
  %v351 = vunpack.c.l.b16 %v84
  %v352 = vunpack.c.h.b16 %v84
  %v353 = vunpack.c.l.b16 %v85
  %v354 = vunpack.c.h.b16 %v85
  %v355 = vunpack.c.l.b16 %v86
  %v356 = vunpack.c.h.b16 %v86
  %v357 = vunpack.c.l.b16 %v87
  %v358 = vunpack.c.h.b16 %v87
  %v359 = vunpack.c.l.b16 %v88
  %v360 = vunpack.c.h.b16 %v88
  %v361 = vunpack.c.l.b16 %v89
  %v362 = vunpack.c.h.b16 %v89
  %v363 = vunpack.c.l.b16 %v90
  %v364 = vunpack.c.h.b16 %v90
  %v365 = vunpack.c.l.b16 %v91
  %v366 = vunpack.c.h.b16 %v91
  %v367 = vunpack.c.l.b16 %v92
  %v368 = vunpack.c.h.b16 %v92
  %v369 = vunpack.c.l.b16 %v93
  %v370 = vunpack.c.h.b16 %v93
  %v371 = vunpack.c.l.b16 %v94
  %v372 = vunpack.c.h.b16 %v94
  %v373 = vunpack.c.l.b16 %v95
  %v374 = vunpack.c.h.b16 %v95
  %v375 = vunpack.c.l.b16 %v96
  %v376 = vunpack.c.h.b16 %v96
  %v377 = vunpack.c.l.b16 %v97
  %v378 = vunpack.c.h.b16 %v97
  %v379 = vunpack.c.l.b16 %v98
  %v380 = vunpack.c.h.b16 %v98
  %v381 = vunpack.c.l.b16 %v99
  %v382 = vunpack.c.h.b16 %v99
  %v383 = vunpack.c.l.b16 %v100
  %v384 = vunpack.c.h.b16 %v100
  %v385 = vunpack.c.l.b16 %v101
  %v386 = vunpack.c.h.b16 %v101
  %v387 = vunpack.c.l.b16 %v102
  %v388 = vunpack.c.h.b16 %v102
  %v389 = vunpack.c.l.b16 %v103
  %v390 = vunpack.c.h.b16 %v103
  %v391 = vunpack.c.l.b16 %v104
  %v392 = vunpack.c.h.b16 %v104
  %v393 = vunpack.c.l.b16 %v105
  %v394 = vunpack.c.h.b16 %v105
  %v395 = vunpack.c.l.b16 %v106
  %v396 = vunpack.c.h.b16 %v106
  %v397 = vunpack.c.l.b16 %v107
  %v398 = vunpack.c.h.b16 %v107
  %v399 = vunpack.c.l.b16 %v108
  %v400 = vunpack.c.h.b16 %v108
  %v401 = vunpack.c.l.b16 %v109
  %v402 = vunpack.c.h.b16 %v109
  %v403 = vunpack.c.l.b16 %v110
  %v404 = vunpack.c.h.b16 %v110
  %v405 = vunpack.c.l.b16 %v111
  %v406 = vunpack.c.h.b16 %v111
  %v407 = vunpack.c.l.b16 %v112
  %v408 = vunpack.c.h.b16 %v112
  %v409 = vunpack.c.l.b16 %v113
  %v410 = vunpack.c.h.b16 %v113
  %v411 = vunpack.c.l.b16 %v114
  %v412 = vunpack.c.h.b16 %v114
  %v413 = vunpack.c.l.b16 %v115
  %v414 = vunpack.c.h.b16 %v115
  %v415 = vunpack.c.l.b16 %v116
  %v416 = vunpack.c.h.b16 %v116
  %v417 = vunpack.c.l.b16 %v117
  %v418 = vunpack.c.h.b16 %v117
  %v419 = vunpack.c.l.b16 %v118
  %v420 = vunpack.c.h.b16 %v118
  %v421 = vunpack.c.l.b16 %v119
  %v422 = vunpack.c.h.b16 %v119
  %v423 = vunpack.c.l.b16 %v120
  %v424 = vunpack.c.h.b16 %v120
  %v425 = vunpack.c.l.b16 %v121
  %v426 = vunpack.c.h.b16 %v121
  %v427 = vunpack.c.l.b16 %v122
  %v428 = vunpack.c.h.b16 %v122
  %v429 = vunpack.c.l.b16 %v123
  %v430 = vunpack.c.h.b16 %v123
  %v431 = vunpack.c.l.b16 %v124
  %v432 = vunpack.c.h.b16 %v124
  %v433 = vunpack.c.l.b16 %v125
  %v434 = vunpack.c.h.b16 %v125
  %v435 = vunpack.c.l.b16 %v126
  %v436 = vunpack.c.h.b16 %v126
  %v437 = vunpack.c.l.b16 %v127
  %v438 = vunpack.c.h.b16 %v127
  %v439 = vunpack.c.l.b16 %v128
  %v440 = vunpack.c.h.b16 %v128
  %v441 = vunpack.c.l.b16 %v129
  %v442 = vunpack.c.h.b16 %v129
  %v443 = vunpack.c.l.b16 %v130
  %v444 = vunpack.c.h.b16 %v130
  %v445 = vunpack.c.l.b16 %v131
  %v446 = vunpack.c.h.b16 %v131
  %v447 = vunpack.c.l.b16 %v132
  %v448 = vunpack.c.h.b16 %v132
  %v449 = vunpack.c.l.b16 %v133
  %v450 = vunpack.c.h.b16 %v133
  %v451 = vunpack.c.l.b16 %v134
  %v452 = vunpack.c.h.b16 %v134
  %v453 = vunpack.c.l.b16 %v135
  %v454 = vunpack.c.h.b16 %v135
  %v455 = vunpack.c.l.b16 %v136
  %v456 = vunpack.c.h.b16 %v136
  %v457 = vunpack.c.l.b16 %v137
  %v458 = vunpack.c.h.b16 %v137
  %v459 = vunpack.c.l.b16 %v138
  %v460 = vunpack.c.h.b16 %v138
  %v461 = vunpack.c.l.b16 %v139
  %v462 = vunpack.c.h.b16 %v139
  %v463 = vunpack.c.l.b16 %v140
  %v464 = vunpack.c.h.b16 %v140
  %v465 = vunpack.c.l.b16 %v141
  %v466 = vunpack.c.h.b16 %v141
  %v467 = vunpack.c.l.b16 %v142
  %v468 = vunpack.c.h.b16 %v142
  %v469 = vunpack.c.l.b16 %v143
  %v470 = vunpack.c.h.b16 %v143
  %v471 = vunpack.c.l.b16 %v144
  %v472 = vunpack.c.h.b16 %v144
  %v473 = vunpack.c.l.b16 %v145
  %v474 = vunpack.c.h.b16 %v145
  %v475 = vunpack.c.l.b16 %v146
  %v476 = vunpack.c.h.b16 %v146
  %v477 = vpack.c.b16 %v283, %v281
  %v478 = vpack.c.b16 %v284, %v282
  %v479 = vpack.c.b16 %v287, %v285
  %v480 = vpack.c.b16 %v288, %v286
  %v481 = vpack.c.b16 %v291, %v289
  %v482 = vpack.c.b16 %v292, %v290
  %v483 = vpack.c.b16 %v295, %v293
  %v484 = vpack.c.b16 %v296, %v294
  %v485 = vpack.c.b16 %v299, %v297
  %v486 = vpack.c.b16 %v300, %v298
  %v487 = vpack.c.b16 %v303, %v301
  %v488 = vpack.c.b16 %v304, %v302
  %v489 = vpack.c.b16 %v307, %v305
  %v490 = vpack.c.b16 %v308, %v306
  %v491 = vpack.c.b16 %v311, %v309
  %v492 = vpack.c.b16 %v312, %v310
  %v493 = vpack.c.b16 %v315, %v313
  %v494 = vpack.c.b16 %v316, %v314
  %v495 = vpack.c.b16 %v319, %v317
  %v496 = vpack.c.b16 %v320, %v318
  %v497 = vpack.c.b16 %v323, %v321
  %v498 = vpack.c.b16 %v324, %v322
  %v499 = vpack.c.b16 %v327, %v325
  %v500 = vpack.c.b16 %v328, %v326
  %v501 = vpack.c.b16 %v331, %v329
  %v502 = vpack.c.b16 %v332, %v330
  %v503 = vpack.c.b16 %v335, %v333
  %v504 = vpack.c.b16 %v336, %v334
  %v505 = vpack.c.b16 %v339, %v337
  %v506 = vpack.c.b16 %v340, %v338
  %v507 = vpack.c.b16 %v343, %v341
  %v508 = vpack.c.b16 %v344, %v342
  %v509 = vpack.c.b16 %v347, %v345
  %v510 = vpack.c.b16 %v348, %v346
  %v511 = vpack.c.b16 %v351, %v349
  %v512 = vpack.c.b16 %v352, %v350
  %v513 = vpack.c.b16 %v355, %v353
  %v514 = vpack.c.b16 %v356, %v354
  %v515 = vpack.c.b16 %v359, %v357
  %v516 = vpack.c.b16 %v360, %v358
  %v517 = vpack.c.b16 %v363, %v361
  %v518 = vpack.c.b16 %v364, %v362
  %v519 = vpack.c.b16 %v367, %v365
  %v520 = vpack.c.b16 %v368, %v366
  %v521 = vpack.c.b16 %v371, %v369
  %v522 = vpack.c.b16 %v372, %v370
  %v523 = vpack.c.b16 %v375, %v373
  %v524 = vpack.c.b16 %v376, %v374
  %v525 = vpack.c.b16 %v379, %v377
  %v526 = vpack.c.b16 %v380, %v378
  %v527 = vpack.c.b16 %v383, %v381
  %v528 = vpack.c.b16 %v384, %v382
  %v529 = vpack.c.b16 %v387, %v385
  %v530 = vpack.c.b16 %v388, %v386
  %v531 = vpack.c.b16 %v391, %v389
  %v532 = vpack.c.b16 %v392, %v390
  %v533 = vpack.c.b16 %v395, %v393
  %v534 = vpack.c.b16 %v396, %v394
  %v535 = vpack.c.b16 %v399, %v397
  %v536 = vpack.c.b16 %v400, %v398
  %v537 = vpack.c.b16 %v403, %v401
  %v538 = vpack.c.b16 %v404, %v402
  %v539 = vpack.c.b16 %v407, %v405
  %v540 = vpack.c.b16 %v408, %v406
  %v541 = vpack.c.b16 %v411, %v409
  %v542 = vpack.c.b16 %v412, %v410
  %v543 = vpack.c.b16 %v415, %v413
  %v544 = vpack.c.b16 %v416, %v414
  %v545 = vpack.c.b16 %v419, %v417
  %v546 = vpack.c.b16 %v420, %v418
  %v547 = vpack.c.b16 %v423, %v421
  %v548 = vpack.c.b16 %v424, %v422
  %v549 = vpack.c.b16 %v427, %v425
  %v550 = vpack.c.b16 %v428, %v426
  %v551 = vpack.c.b16 %v431, %v429
  %v552 = vpack.c.b16 %v432, %v430
  %v553 = vpack.c.b16 %v435, %v433
  %v554 = vpack.c.b16 %v436, %v434
  %v555 = vpack.c.b16 %v439, %v437
  %v556 = vpack.c.b16 %v440, %v438
  %v557 = vpack.c.b16 %v443, %v441
  %v558 = vpack.c.b16 %v444, %v442
  %v559 = vpack.c.b16 %v447, %v445
  %v560 = vpack.c.b16 %v448, %v446
  %v561 = vpack.c.b16 %v451, %v449
  %v562 = vpack.c.b16 %v452, %v450
  %v563 = vpack.c.b16 %v455, %v453
  %v564 = vpack.c.b16 %v456, %v454
  %v565 = vpack.c.b16 %v459, %v457
  %v566 = vpack.c.b16 %v460, %v458
  %v567 = vpack.c.b16 %v463, %v461
  %v568 = vpack.c.b16 %v464, %v462
  %v569 = vpack.c.b16 %v467, %v465
  %v570 = vpack.c.b16 %v468, %v466
  %v571 = vpack.c.b16 %v471, %v469
  %v572 = vpack.c.b16 %v472, %v470
  %v573 = vpack.c.b16 %v475, %v473
  %v574 = vpack.c.b16 %v476, %v474
  %vm673 = vcmask 130048
  %v675 = vsel %vm673, %v176, 0
  %677 = vmatprep.subr.bf16.mxu0 %v478
  %678 = vmatpush1.bf16.msra.mxu0 %v477
  %679 = vmatprep.subr.bf16.mxu0 %v480
  %680 = vmatpush1.bf16.msra.mxu0 %v479
  %681 = vmatprep.subr.bf16.mxu0 %v482
  %682 = vmatpush1.bf16.msra.mxu0 %v481
  %683 = vmatprep.subr.bf16.mxu0 %v484
  %684 = vmatpush1.bf16.msra.mxu0 %v483
  %685 = vmatprep.subr.bf16.mxu0 %v486
  %686 = vmatpush1.bf16.msra.mxu0 %v485
  %687 = vmatprep.subr.bf16.mxu0 %v488
  %688 = vmatpush1.bf16.msra.mxu0 %v487
  %689 = vmatprep.subr.bf16.mxu0 %v490
  %690 = vmatpush1.bf16.msra.mxu0 %v489
  %691 = vmatprep.subr.bf16.mxu0 %v492
  %692 = vmatpush1.bf16.msra.mxu0 %v491
  %693 = vmatprep.subr.bf16.mxu0 %v494
  %694 = vmatpush1.bf16.msra.mxu0 %v493
  %695 = vmatprep.subr.bf16.mxu0 %v496
  %696 = vmatpush1.bf16.msra.mxu0 %v495
  %697 = vmatprep.subr.bf16.mxu0 %v498
  %698 = vmatpush1.bf16.msra.mxu0 %v497
  %699 = vmatprep.subr.bf16.mxu0 %v500
  %700 = vmatpush1.bf16.msra.mxu0 %v499
  %701 = vmatprep.subr.bf16.mxu0 %v502
  %702 = vmatpush1.bf16.msra.mxu0 %v501
  %703 = vmatprep.subr.bf16.mxu0 %v504
  %704 = vmatpush1.bf16.msra.mxu0 %v503
  %705 = vmatprep.subr.bf16.mxu0 %v506
  %706 = vmatpush1.bf16.msra.mxu0 %v505
  %707 = vmatprep.subr.bf16.mxu0 %v508
  %708 = vmatpush1.bf16.msra.mxu0 %v507
  %709 = vmatprep.mubr.bf16.mxu0 %v171
  %710 = vmatmul.mubr.bf16.gmra.mrb[0].mxu0 %v170
  %v711 = vpop.f32.mrb[0].mxu0
  %v712 = vadd.f32 %v152, %v711
  %v713 = vpop.f32.mrb[0].mxu0
  %v714 = vadd.f32 %v156, %v713
  %v715 = vpop.f32.mrb[0].mxu0
  %v716 = vpop.f32.mrb[0].mxu0
  %717 = vdwg.mxu0
  %718 = vmatprep.subr.bf16.mxu0 %v510
  %719 = vmatpush1.bf16.msra.mxu0 %v509
  %720 = vmatprep.subr.bf16.mxu0 %v512
  %721 = vmatpush1.bf16.msra.mxu0 %v511
  %722 = vmatprep.subr.bf16.mxu0 %v514
  %723 = vmatpush1.bf16.msra.mxu0 %v513
  %724 = vmatprep.subr.bf16.mxu0 %v516
  %725 = vmatpush1.bf16.msra.mxu0 %v515
  %726 = vmatprep.subr.bf16.mxu0 %v518
  %727 = vmatpush1.bf16.msra.mxu0 %v517
  %728 = vmatprep.subr.bf16.mxu0 %v520
  %729 = vmatpush1.bf16.msra.mxu0 %v519
  %730 = vmatprep.subr.bf16.mxu0 %v522
  %731 = vmatpush1.bf16.msra.mxu0 %v521
  %732 = vmatprep.subr.bf16.mxu0 %v524
  %733 = vmatpush1.bf16.msra.mxu0 %v523
  %734 = vmatprep.subr.bf16.mxu0 %v526
  %735 = vmatpush1.bf16.msra.mxu0 %v525
  %736 = vmatprep.subr.bf16.mxu0 %v528
  %737 = vmatpush1.bf16.msra.mxu0 %v527
  %738 = vmatprep.subr.bf16.mxu0 %v530
  %739 = vmatpush1.bf16.msra.mxu0 %v529
  %740 = vmatprep.subr.bf16.mxu0 %v532
  %741 = vmatpush1.bf16.msra.mxu0 %v531
  %742 = vmatprep.subr.bf16.mxu0 %v534
  %743 = vmatpush1.bf16.msra.mxu0 %v533
  %744 = vmatprep.subr.bf16.mxu0 %v536
  %745 = vmatpush1.bf16.msra.mxu0 %v535
  %746 = vmatprep.subr.bf16.mxu0 %v538
  %747 = vmatpush1.bf16.msra.mxu0 %v537
  %748 = vmatprep.subr.bf16.mxu0 %v540
  %749 = vmatpush1.bf16.msra.mxu0 %v539
  %750 = vmatprep.mubr.bf16.mxu0 %v173
  %751 = vmatmul.mubr.bf16.gmra.mrb[0].mxu0 %v172
  %v752 = vpop.f32.mrb[0].mxu0
  %v753 = vadd.f32 %v712, %v752
  %v754 = vpop.f32.mrb[0].mxu0
  %v755 = vadd.f32 %v714, %v754
  %v756 = vpop.f32.mrb[0].mxu0
  %v757 = vpop.f32.mrb[0].mxu0
  %758 = vdwg.mxu0
  %759 = vmatprep.subr.bf16.mxu0 %v542
  %760 = vmatpush1.bf16.msra.mxu0 %v541
  %761 = vmatprep.subr.bf16.mxu0 %v544
  %762 = vmatpush1.bf16.msra.mxu0 %v543
  %763 = vmatprep.subr.bf16.mxu0 %v546
  %764 = vmatpush1.bf16.msra.mxu0 %v545
  %765 = vmatprep.subr.bf16.mxu0 %v548
  %766 = vmatpush1.bf16.msra.mxu0 %v547
  %767 = vmatprep.subr.bf16.mxu0 %v550
  %768 = vmatpush1.bf16.msra.mxu0 %v549
  %769 = vmatprep.subr.bf16.mxu0 %v552
  %770 = vmatpush1.bf16.msra.mxu0 %v551
  %771 = vmatprep.subr.bf16.mxu0 %v554
  %772 = vmatpush1.bf16.msra.mxu0 %v553
  %773 = vmatprep.subr.bf16.mxu0 %v556
  %774 = vmatpush1.bf16.msra.mxu0 %v555
  %775 = vmatprep.subr.bf16.mxu0 %v558
  %776 = vmatpush1.bf16.msra.mxu0 %v557
  %777 = vmatprep.subr.bf16.mxu0 %v560
  %778 = vmatpush1.bf16.msra.mxu0 %v559
  %779 = vmatprep.subr.bf16.mxu0 %v562
  %780 = vmatpush1.bf16.msra.mxu0 %v561
  %781 = vmatprep.subr.bf16.mxu0 %v564
  %782 = vmatpush1.bf16.msra.mxu0 %v563
  %783 = vmatprep.subr.bf16.mxu0 %v566
  %784 = vmatpush1.bf16.msra.mxu0 %v565
  %785 = vmatprep.subr.bf16.mxu0 %v568
  %786 = vmatpush1.bf16.msra.mxu0 %v567
  %787 = vmatprep.subr.bf16.mxu0 %v570
  %788 = vmatpush1.bf16.msra.mxu0 %v569
  %789 = vmatprep.subr.bf16.mxu0 %v572
  %790 = vmatpush1.bf16.msra.mxu0 %v571
  %791 = vmatprep.mubr.bf16.mxu0 %v175
  %792 = vmatmul.mubr.bf16.gmra.mrb[0].mxu0 %v174
  %v793 = vpop.f32.mrb[0].mxu0
  %v794 = vadd.f32 %v753, %v793
  %v795 = vpop.f32.mrb[0].mxu0
  %v796 = vadd.f32 %v755, %v795
  %v797 = vpop.f32.mrb[0].mxu0
  %v798 = vpop.f32.mrb[0].mxu0
  %799 = vdwg.mxu0
  %800 = vmatprep.subr.bf16.mxu0 %v574
  %801 = vmatpush1.bf16.msra.mxu0 %v573
  %802 = vmatprep.subr.bf16.mxu0 0
  %803 = vmatpush1.bf16.msra.mxu0 0
  %804 = vmatprep.subr.bf16.mxu0 0
  %805 = vmatpush1.bf16.msra.mxu0 0
  %806 = vmatprep.subr.bf16.mxu0 0
  %807 = vmatpush1.bf16.msra.mxu0 0
  %808 = vmatprep.subr.bf16.mxu0 0
  %809 = vmatpush1.bf16.msra.mxu0 0
  %810 = vmatprep.subr.bf16.mxu0 0
  %811 = vmatpush1.bf16.msra.mxu0 0
  %812 = vmatprep.subr.bf16.mxu0 0
  %813 = vmatpush1.bf16.msra.mxu0 0
  %814 = vmatprep.subr.bf16.mxu0 0
  %815 = vmatpush1.bf16.msra.mxu0 0
  %816 = vmatprep.subr.bf16.mxu0 0
  %817 = vmatpush1.bf16.msra.mxu0 0
  %818 = vmatprep.subr.bf16.mxu0 0
  %819 = vmatpush1.bf16.msra.mxu0 0
  %820 = vmatprep.subr.bf16.mxu0 0
  %821 = vmatpush1.bf16.msra.mxu0 0
  %822 = vmatprep.subr.bf16.mxu0 0
  %823 = vmatpush1.bf16.msra.mxu0 0
  %824 = vmatprep.subr.bf16.mxu0 0
  %825 = vmatpush1.bf16.msra.mxu0 0
  %826 = vmatprep.subr.bf16.mxu0 0
  %827 = vmatpush1.bf16.msra.mxu0 0
  %828 = vmatprep.subr.bf16.mxu0 0
  %829 = vmatpush1.bf16.msra.mxu0 0
  %830 = vmatprep.subr.bf16.mxu0 0
  %831 = vmatpush1.bf16.msra.mxu0 0
  %832 = vmatprep.mubr.bf16.mxu0 0
  %833 = vmatmul.mubr.bf16.gmra.mrb[0].mxu0 %v675
  %v834 = vpop.f32.mrb[0].mxu0
  %v835 = vadd.f32 %v794, %v834
  %v836 = vpop.f32.mrb[0].mxu0
  %v837 = vadd.f32 %v796, %v836
  %v838 = vpop.f32.mrb[0].mxu0
  %v839 = vpop.f32.mrb[0].mxu0
  %840 = vdwg.mxu0
  %v841 = vmax.f32 %v835, 0.0
  %v842 = vmax.f32 %v837, 0.0
  %v843 = vpack.c.bf16 %v841, %v841
  %v844 = vpack.c.bf16 %v842, %v842
  %v845 = vld [vmem:[%s3] sm:$0xf]
  %v846 = vld [vmem:[%s3 + $0x4] sm:$0xf]
  %v847 = vld [vmem:[%s3 + $0x8] sm:$0xf]
  %v848 = vld [vmem:[%s3 + $0xc] sm:$0xf]
  %v849 = vld [vmem:[%s3 + $0x10] sm:$0xf]
  %v850 = vld [vmem:[%s3 + $0x14] sm:$0xf]
  %v851 = vld [vmem:[%s3 + $0x18] sm:$0xf]
  %v852 = vld [vmem:[%s3 + $0x1c] sm:$0xf]
  %v853 = vld [vmem:[%s3 + $0x20] sm:$0xf]
  %v854 = vld [vmem:[%s3 + $0x24] sm:$0xf]
  %v855 = vld [vmem:[%s3 + $0x28] sm:$0xf]
  %v856 = vld [vmem:[%s3 + $0x2c] sm:$0xf]
  %v857 = vld [vmem:[%s3 + $0x30] sm:$0xf]
  %v858 = vld [vmem:[%s3 + $0x34] sm:$0xf]
  %v859 = vld [vmem:[%s3 + $0x38] sm:$0xf]
  %v860 = vld [vmem:[%s3 + $0x3c] sm:$0xf]
  %v861 = vld [vmem:[%s3 + $0x40] sm:$0xf]
  %v862 = vld [vmem:[%s3 + $0x44] sm:$0xf]
  %v863 = vld [vmem:[%s3 + $0x48] sm:$0xf]
  %v864 = vld [vmem:[%s3 + $0x4c] sm:$0xf]
  %v865 = vld [vmem:[%s3 + $0x50] sm:$0xf]
  %v866 = vld [vmem:[%s3 + $0x54] sm:$0xf]
  %v867 = vld [vmem:[%s3 + $0x58] sm:$0xf]
  %v868 = vld [vmem:[%s3 + $0x5c] sm:$0xf]
  %v869 = vld [vmem:[%s3 + $0x60] sm:$0xf]
  %v870 = vld [vmem:[%s3 + $0x64] sm:$0xf]
  %v871 = vld [vmem:[%s3 + $0x68] sm:$0xf]
  %v872 = vld [vmem:[%s3 + $0x6c] sm:$0xf]
  %v873 = vld [vmem:[%s3 + $0x70] sm:$0xf]
  %v874 = vld [vmem:[%s3 + $0x74] sm:$0xf]
  %v875 = vld [vmem:[%s3 + $0x78] sm:$0xf]
  %v876 = vld [vmem:[%s3 + $0x7c] sm:$0xf]
  %v877 = vld [vmem:[%s4] sm:$0x1]
  %v879 = vlaneseq
  %v880 = vshrl.u32 %v879, 7
  %v881 = vsub.s32 0, %v880
  %v882 = vrot.slane %v877, %v881
  %v916 = vunpack.c.l.b16 %v845
  %v917 = vunpack.c.l.b16 %v846
  %v918 = vunpack.c.l.b16 %v847
  %v919 = vunpack.c.l.b16 %v848
  %v920 = vunpack.c.l.b16 %v849
  %v921 = vunpack.c.l.b16 %v850
  %v922 = vunpack.c.l.b16 %v851
  %v923 = vunpack.c.l.b16 %v852
  %v924 = vunpack.c.l.b16 %v853
  %v925 = vunpack.c.l.b16 %v854
  %v926 = vunpack.c.l.b16 %v855
  %v927 = vunpack.c.l.b16 %v856
  %v928 = vunpack.c.l.b16 %v857
  %v929 = vunpack.c.l.b16 %v858
  %v930 = vunpack.c.l.b16 %v859
  %v931 = vunpack.c.l.b16 %v860
  %v932 = vunpack.c.l.b16 %v861
  %v933 = vunpack.c.l.b16 %v862
  %v934 = vunpack.c.l.b16 %v863
  %v935 = vunpack.c.l.b16 %v864
  %v936 = vunpack.c.l.b16 %v865
  %v937 = vunpack.c.l.b16 %v866
  %v938 = vunpack.c.l.b16 %v867
  %v939 = vunpack.c.l.b16 %v868
  %v940 = vunpack.c.l.b16 %v869
  %v941 = vunpack.c.l.b16 %v870
  %v942 = vunpack.c.l.b16 %v871
  %v943 = vunpack.c.l.b16 %v872
  %v944 = vunpack.c.l.b16 %v873
  %v945 = vunpack.c.l.b16 %v874
  %v946 = vunpack.c.l.b16 %v875
  %v947 = vunpack.c.l.b16 %v876
  %v948 = vpack.c.b16 %v917, %v916
  %v949 = vpack.c.b16 %v919, %v918
  %v950 = vpack.c.b16 %v921, %v920
  %v951 = vpack.c.b16 %v923, %v922
  %v952 = vpack.c.b16 %v925, %v924
  %v953 = vpack.c.b16 %v927, %v926
  %v954 = vpack.c.b16 %v929, %v928
  %v955 = vpack.c.b16 %v931, %v930
  %v956 = vpack.c.b16 %v933, %v932
  %v957 = vpack.c.b16 %v935, %v934
  %v958 = vpack.c.b16 %v937, %v936
  %v959 = vpack.c.b16 %v939, %v938
  %v960 = vpack.c.b16 %v941, %v940
  %v961 = vpack.c.b16 %v943, %v942
  %v962 = vpack.c.b16 %v945, %v944
  %v963 = vpack.c.b16 %v947, %v946
  %980 = vmatprep.subr.bf16.mxu0 0
  %981 = vmatpush1.bf16.msra.mxu0 %v948
  %982 = vmatprep.subr.bf16.mxu0 0
  %983 = vmatpush1.bf16.msra.mxu0 %v949
  %984 = vmatprep.subr.bf16.mxu0 0
  %985 = vmatpush1.bf16.msra.mxu0 %v950
  %986 = vmatprep.subr.bf16.mxu0 0
  %987 = vmatpush1.bf16.msra.mxu0 %v951
  %988 = vmatprep.subr.bf16.mxu0 0
  %989 = vmatpush1.bf16.msra.mxu0 %v952
  %990 = vmatprep.subr.bf16.mxu0 0
  %991 = vmatpush1.bf16.msra.mxu0 %v953
  %992 = vmatprep.subr.bf16.mxu0 0
  %993 = vmatpush1.bf16.msra.mxu0 %v954
  %994 = vmatprep.subr.bf16.mxu0 0
  %995 = vmatpush1.bf16.msra.mxu0 %v955
  %996 = vmatprep.subr.bf16.mxu0 0
  %997 = vmatpush1.bf16.msra.mxu0 %v956
  %998 = vmatprep.subr.bf16.mxu0 0
  %999 = vmatpush1.bf16.msra.mxu0 %v957
  %1000 = vmatprep.subr.bf16.mxu0 0
  %1001 = vmatpush1.bf16.msra.mxu0 %v958
  %1002 = vmatprep.subr.bf16.mxu0 0
  %1003 = vmatpush1.bf16.msra.mxu0 %v959
  %1004 = vmatprep.subr.bf16.mxu0 0
  %1005 = vmatpush1.bf16.msra.mxu0 %v960
  %1006 = vmatprep.subr.bf16.mxu0 0
  %1007 = vmatpush1.bf16.msra.mxu0 %v961
  %1008 = vmatprep.subr.bf16.mxu0 0
  %1009 = vmatpush1.bf16.msra.mxu0 %v962
  %1010 = vmatprep.subr.bf16.mxu0 0
  %1011 = vmatpush1.bf16.msra.mxu0 %v963
  %1012 = vmatprep.mubr.bf16.mxu0 %v844
  %1013 = vmatmul.mubr.bf16.gmra.mrb[0].mxu0 %v843
  %v1014 = vpop.f32.mrb[0].mxu0
  %v1015 = vadd.f32 %v882, %v1014
  %v1016 = vpop.f32.mrb[0].mxu0
  %v1017 = vpop.f32.mrb[0].mxu0
  %v1018 = vpop.f32.mrb[0].mxu0
  %1019 = vdwg.mxu0
  %v1020 = vmax.f32 %v1015, 0.0
  %v1021 = vpack.c.bf16 %v1020, %v1020
  %v1022 = vld [vmem:[%s5] sm:$0xf]
  %v1023 = vld [vmem:[%s5 + $0x4] sm:$0xf]
  %v1024 = vld [vmem:[%s5 + $0x8] sm:$0xf]
  %v1025 = vld [vmem:[%s5 + $0xc] sm:$0xf]
  %v1026 = vld [vmem:[%s5 + $0x10] sm:$0xf]
  %v1027 = vld [vmem:[%s5 + $0x14] sm:$0xf]
  %v1028 = vld [vmem:[%s5 + $0x18] sm:$0xf]
  %v1029 = vld [vmem:[%s5 + $0x1c] sm:$0xf]
  %v1030 = vld [vmem:[%s6] sm:$0x1]
  %v1032 = vlaneseq
  %v1033 = vshrl.u32 %v1032, 7
  %v1034 = vsub.s32 0, %v1033
  %v1035 = vrot.slane %v1030, %v1034
  %v1045 = vunpack.c.l.b16 %v1022
  %v1046 = vunpack.c.l.b16 %v1023
  %v1047 = vunpack.c.l.b16 %v1024
  %v1048 = vunpack.c.l.b16 %v1025
  %v1049 = vunpack.c.l.b16 %v1026
  %v1050 = vunpack.c.l.b16 %v1027
  %v1051 = vunpack.c.l.b16 %v1028
  %v1052 = vunpack.c.l.b16 %v1029
  %v1053 = vpack.c.b16 %v1046, %v1045
  %v1054 = vpack.c.b16 %v1048, %v1047
  %v1055 = vpack.c.b16 %v1050, %v1049
  %v1056 = vpack.c.b16 %v1052, %v1051
  %vm1061 = vcmask 523264
  %v1063 = vsel %vm1061, %v1021, 0
  %1065 = vmatprep.subr.bf16.mxu0 0
  %1066 = vmatpush1.bf16.msra.mxu0 %v1053
  %1067 = vmatprep.subr.bf16.mxu0 0
  %1068 = vmatpush1.bf16.msra.mxu0 %v1054
  %1069 = vmatprep.subr.bf16.mxu0 0
  %1070 = vmatpush1.bf16.msra.mxu0 %v1055
  %1071 = vmatprep.subr.bf16.mxu0 0
  %1072 = vmatpush1.bf16.msra.mxu0 %v1056
  %1073 = vmatprep.subr.bf16.mxu0 0
  %1074 = vmatpush1.bf16.msra.mxu0 0
  %1075 = vmatprep.subr.bf16.mxu0 0
  %1076 = vmatpush1.bf16.msra.mxu0 0
  %1077 = vmatprep.subr.bf16.mxu0 0
  %1078 = vmatpush1.bf16.msra.mxu0 0
  %1079 = vmatprep.subr.bf16.mxu0 0
  %1080 = vmatpush1.bf16.msra.mxu0 0
  %1081 = vmatprep.subr.bf16.mxu0 0
  %1082 = vmatpush1.bf16.msra.mxu0 0
  %1083 = vmatprep.subr.bf16.mxu0 0
  %1084 = vmatpush1.bf16.msra.mxu0 0
  %1085 = vmatprep.subr.bf16.mxu0 0
  %1086 = vmatpush1.bf16.msra.mxu0 0
  %1087 = vmatprep.subr.bf16.mxu0 0
  %1088 = vmatpush1.bf16.msra.mxu0 0
  %1089 = vmatprep.subr.bf16.mxu0 0
  %1090 = vmatpush1.bf16.msra.mxu0 0
  %1091 = vmatprep.subr.bf16.mxu0 0
  %1092 = vmatpush1.bf16.msra.mxu0 0
  %1093 = vmatprep.subr.bf16.mxu0 0
  %1094 = vmatpush1.bf16.msra.mxu0 0
  %1095 = vmatprep.subr.bf16.mxu0 0
  %1096 = vmatpush1.bf16.msra.mxu0 0
  %1097 = vmatprep.mubr.bf16.mxu0 0
  %1098 = vmatmul.mubr.bf16.gmra.mrb[0].mxu0 %v1063
  %v1099 = vpop.f32.mrb[0].mxu0
  %v1100 = vadd.f32 %v1035, %v1099
  %v1101 = vpop.f32.mrb[0].mxu0
  %v1102 = vpop.f32.mrb[0].mxu0
  %v1103 = vpop.f32.mrb[0].mxu0
  %1104 = vdwg.mxu0
  %v1105 = vmax.f32 %v1100, 0.0
  %v1106 = vpack.c.bf16 %v1105, %v1105
  %v1107 = vld [vmem:[%s7] sm:$0xf]
  %v1108 = vld [vmem:[%s7 + $0x4] sm:$0xf]
  %v1109 = vld [vmem:[%s7 + $0x8] sm:$0xf]
  %v1110 = vld [vmem:[%s7 + $0xc] sm:$0xf]
  %v1111 = vld [vmem:[%s7 + $0x10] sm:$0xf]
  %v1112 = vld [vmem:[%s7 + $0x14] sm:$0xf]
  %v1113 = vld [vmem:[%s7 + $0x18] sm:$0xf]
  %v1114 = vld [vmem:[%s7 + $0x1c] sm:$0xf]
  %v1115 = vld [vmem:[%s7 + $0x20] sm:$0xf]
  %v1116 = vld [vmem:[%s7 + $0x24] sm:$0xf]
  %v1117 = vld [vmem:[%s7 + $0x28] sm:$0xf]
  %v1118 = vld [vmem:[%s7 + $0x2c] sm:$0xf]
  %v1119 = vld [vmem:[%s7 + $0x30] sm:$0xf]
  %v1120 = vld [vmem:[%s7 + $0x34] sm:$0xf]
  %v1121 = vld [vmem:[%s7 + $0x38] sm:$0xf]
  %v1122 = vld [vmem:[%s7 + $0x3c] sm:$0xf]
  %v1123 = vld [vmem:[%s8] sm:$0x1]
  %v1125 = vlaneseq
  %v1126 = vshrl.u32 %v1125, 7
  %v1127 = vsub.s32 0, %v1126
  %v1128 = vrot.slane %v1123, %v1127
  %v1146 = vunpack.c.l.b16 %v1107
  %v1147 = vunpack.c.l.b16 %v1108
  %v1148 = vunpack.c.l.b16 %v1109
  %v1149 = vunpack.c.l.b16 %v1110
  %v1150 = vunpack.c.l.b16 %v1111
  %v1151 = vunpack.c.l.b16 %v1112
  %v1152 = vunpack.c.l.b16 %v1113
  %v1153 = vunpack.c.l.b16 %v1114
  %v1154 = vunpack.c.l.b16 %v1115
  %v1155 = vunpack.c.l.b16 %v1116
  %v1156 = vunpack.c.l.b16 %v1117
  %v1157 = vunpack.c.l.b16 %v1118
  %v1158 = vunpack.c.l.b16 %v1119
  %v1159 = vunpack.c.l.b16 %v1120
  %v1160 = vunpack.c.l.b16 %v1121
  %v1161 = vunpack.c.l.b16 %v1122
  %v1162 = vpack.c.b16 %v1147, %v1146
  %v1163 = vpack.c.b16 %v1149, %v1148
  %v1164 = vpack.c.b16 %v1151, %v1150
  %v1165 = vpack.c.b16 %v1153, %v1152
  %v1166 = vpack.c.b16 %v1155, %v1154
  %v1167 = vpack.c.b16 %v1157, %v1156
  %v1168 = vpack.c.b16 %v1159, %v1158
  %v1169 = vpack.c.b16 %v1161, %v1160
  %1178 = vmatprep.subr.bf16.mxu0 0
  %1179 = vmatpush1.bf16.msra.mxu0 %v1162
  %1180 = vmatprep.subr.bf16.mxu0 0
  %1181 = vmatpush1.bf16.msra.mxu0 %v1163
  %1182 = vmatprep.subr.bf16.mxu0 0
  %1183 = vmatpush1.bf16.msra.mxu0 %v1164
  %1184 = vmatprep.subr.bf16.mxu0 0
  %1185 = vmatpush1.bf16.msra.mxu0 %v1165
  %1186 = vmatprep.subr.bf16.mxu0 0
  %1187 = vmatpush1.bf16.msra.mxu0 %v1166
  %1188 = vmatprep.subr.bf16.mxu0 0
  %1189 = vmatpush1.bf16.msra.mxu0 %v1167
  %1190 = vmatprep.subr.bf16.mxu0 0
  %1191 = vmatpush1.bf16.msra.mxu0 %v1168
  %1192 = vmatprep.subr.bf16.mxu0 0
  %1193 = vmatpush1.bf16.msra.mxu0 %v1169
  %1194 = vmatprep.subr.bf16.mxu0 0
  %1195 = vmatpush1.bf16.msra.mxu0 0
  %1196 = vmatprep.subr.bf16.mxu0 0
  %1197 = vmatpush1.bf16.msra.mxu0 0
  %1198 = vmatprep.subr.bf16.mxu0 0
  %1199 = vmatpush1.bf16.msra.mxu0 0
  %1200 = vmatprep.subr.bf16.mxu0 0
  %1201 = vmatpush1.bf16.msra.mxu0 0
  %1202 = vmatprep.subr.bf16.mxu0 0
  %1203 = vmatpush1.bf16.msra.mxu0 0
  %1204 = vmatprep.subr.bf16.mxu0 0
  %1205 = vmatpush1.bf16.msra.mxu0 0
  %1206 = vmatprep.subr.bf16.mxu0 0
  %1207 = vmatpush1.bf16.msra.mxu0 0
  %1208 = vmatprep.subr.bf16.mxu0 0
  %1209 = vmatpush1.bf16.msra.mxu0 0
  %1210 = vmatprep.mubr.bf16.mxu0 0
  %1211 = vmatmul.mubr.bf16.gmra.mrb[0].mxu0 %v1106
  %v1212 = vpop.f32.mrb[0].mxu0
  %v1213 = vadd.f32 %v1128, %v1212
  %v1214 = vpop.f32.mrb[0].mxu0
  %v1215 = vpop.f32.mrb[0].mxu0
  %v1216 = vpop.f32.mrb[0].mxu0
  %1217 = vdwg.mxu0
  %v1218 = vmax.f32 %v1213, 0.0
  %v1219 = vpack.c.bf16 %v1218, %v1218
  %v1220 = vld [vmem:[%s9] sm:$0xff]
  %v1221 = vld [vmem:[%s9 + $0x8] sm:$0xff]
  %v1222 = vld [vmem:[%s9 + $0x10] sm:$0xff]
  %v1223 = vld [vmem:[%s9 + $0x18] sm:$0xff]
  %v1224 = vld [vmem:[%s9 + $0x20] sm:$0xff]
  %v1225 = vld [vmem:[%s9 + $0x28] sm:$0xff]
  %v1226 = vld [vmem:[%s9 + $0x30] sm:$0xff]
  %v1227 = vld [vmem:[%s9 + $0x38] sm:$0xff]
  %v1228 = vld [vmem:[%s10] sm:$0x3]
  %v1230 = vlaneseq
  %v1231 = vshrl.u32 %v1230, 7
  %v1232 = vsub.s32 0, %v1231
  %v1233 = vrot.slane %v1228, %v1232
  %v1234 = vlaneseq
  %v1235 = vshrl.u32 %v1234, 7
  %v1236 = vsub.s32 1, %v1235
  %v1237 = vrot.slane %v1228, %v1236
  %v1248 = vunpack.c.l.b16 %v1220
  %v1249 = vunpack.c.h.b16 %v1220
  %v1250 = vunpack.c.l.b16 %v1221
  %v1251 = vunpack.c.h.b16 %v1221
  %v1252 = vunpack.c.l.b16 %v1222
  %v1253 = vunpack.c.h.b16 %v1222
  %v1254 = vunpack.c.l.b16 %v1223
  %v1255 = vunpack.c.h.b16 %v1223
  %v1256 = vunpack.c.l.b16 %v1224
  %v1257 = vunpack.c.h.b16 %v1224
  %v1258 = vunpack.c.l.b16 %v1225
  %v1259 = vunpack.c.h.b16 %v1225
  %v1260 = vunpack.c.l.b16 %v1226
  %v1261 = vunpack.c.h.b16 %v1226
  %v1262 = vunpack.c.l.b16 %v1227
  %v1263 = vunpack.c.h.b16 %v1227
  %v1264 = vpack.c.b16 %v1250, %v1248
  %v1265 = vpack.c.b16 %v1251, %v1249
  %v1266 = vpack.c.b16 %v1254, %v1252
  %v1267 = vpack.c.b16 %v1255, %v1253
  %v1268 = vpack.c.b16 %v1258, %v1256
  %v1269 = vpack.c.b16 %v1259, %v1257
  %v1270 = vpack.c.b16 %v1262, %v1260
  %v1271 = vpack.c.b16 %v1263, %v1261
  %v1281 = vsel %vm1061, %v1219, 0
  %1283 = vmatprep.subr.bf16.mxu0 %v1265
  %1284 = vmatpush1.bf16.msra.mxu0 %v1264
  %1285 = vmatprep.subr.bf16.mxu0 %v1267
  %1286 = vmatpush1.bf16.msra.mxu0 %v1266
  %1287 = vmatprep.subr.bf16.mxu0 %v1269
  %1288 = vmatpush1.bf16.msra.mxu0 %v1268
  %1289 = vmatprep.subr.bf16.mxu0 %v1271
  %1290 = vmatpush1.bf16.msra.mxu0 %v1270
  %1291 = vmatprep.subr.bf16.mxu0 0
  %1292 = vmatpush1.bf16.msra.mxu0 0
  %1293 = vmatprep.subr.bf16.mxu0 0
  %1294 = vmatpush1.bf16.msra.mxu0 0
  %1295 = vmatprep.subr.bf16.mxu0 0
  %1296 = vmatpush1.bf16.msra.mxu0 0
  %1297 = vmatprep.subr.bf16.mxu0 0
  %1298 = vmatpush1.bf16.msra.mxu0 0
  %1299 = vmatprep.subr.bf16.mxu0 0
  %1300 = vmatpush1.bf16.msra.mxu0 0
  %1301 = vmatprep.subr.bf16.mxu0 0
  %1302 = vmatpush1.bf16.msra.mxu0 0
  %1303 = vmatprep.subr.bf16.mxu0 0
  %1304 = vmatpush1.bf16.msra.mxu0 0
  %1305 = vmatprep.subr.bf16.mxu0 0
  %1306 = vmatpush1.bf16.msra.mxu0 0
  %1307 = vmatprep.subr.bf16.mxu0 0
  %1308 = vmatpush1.bf16.msra.mxu0 0
  %1309 = vmatprep.subr.bf16.mxu0 0
  %1310 = vmatpush1.bf16.msra.mxu0 0
  %1311 = vmatprep.subr.bf16.mxu0 0
  %1312 = vmatpush1.bf16.msra.mxu0 0
  %1313 = vmatprep.subr.bf16.mxu0 0
  %1314 = vmatpush1.bf16.msra.mxu0 0
  %1315 = vmatprep.mubr.bf16.mxu0 0
  %1316 = vmatmul.mubr.bf16.gmra.mrb[0].mxu0 %v1281
  %v1317 = vpop.f32.mrb[0].mxu0
  %v1318 = vadd.f32 %v1233, %v1317
  %v1319 = vpop.f32.mrb[0].mxu0
  %v1320 = vadd.f32 %v1237, %v1319
  %v1321 = vpop.f32.mrb[0].mxu0
  %v1322 = vpop.f32.mrb[0].mxu0
  %1323 = vdwg.mxu0
  %v1324 = vmax.f32 %v1318, 0.0
  %v1325 = vmax.f32 %v1320, 0.0
  %v1326 = vpack.c.bf16 %v1324, %v1324
  %v1327 = vpack.c.bf16 %v1325, %v1325
  %v1328 = vld [vmem:[%s11] sm:$0xff]
  %v1329 = vld [vmem:[%s11 + $0x8] sm:$0xff]
  %v1330 = vld [vmem:[%s11 + $0x10] sm:$0xff]
  %v1331 = vld [vmem:[%s11 + $0x18] sm:$0xf]
  %v1332 = vld [vmem:[%s11 + $0x1c] sm:$0xff]
  %v1333 = vld [vmem:[%s11 + $0x24] sm:$0xff]
  %v1334 = vld [vmem:[%s11 + $0x2c] sm:$0xff]
  %v1335 = vld [vmem:[%s11 + $0x34] sm:$0xf]
  %v1336 = vld [vmem:[%s11 + $0x38] sm:$0xff]
  %v1337 = vld [vmem:[%s11 + $0x40] sm:$0xff]
  %v1338 = vld [vmem:[%s11 + $0x48] sm:$0xff]
  %v1339 = vld [vmem:[%s11 + $0x50] sm:$0xf]
  %v1340 = vld [vmem:[%s11 + $0x54] sm:$0xff]
  %v1341 = vld [vmem:[%s11 + $0x5c] sm:$0xff]
  %v1342 = vld [vmem:[%s11 + $0x64] sm:$0xff]
  %v1343 = vld [vmem:[%s11 + $0x6c] sm:$0xf]
  %v1344 = vld [vmem:[%s11 + $0x70] sm:$0xff]
  %v1345 = vld [vmem:[%s11 + $0x78] sm:$0xff]
  %v1346 = vld [vmem:[%s11 + $0x80] sm:$0xff]
  %v1347 = vld [vmem:[%s11 + $0x88] sm:$0xf]
  %v1348 = vld [vmem:[%s11 + $0x8c] sm:$0xff]
  %v1349 = vld [vmem:[%s11 + $0x94] sm:$0xff]
  %v1350 = vld [vmem:[%s11 + $0x9c] sm:$0xff]
  %v1351 = vld [vmem:[%s11 + $0xa4] sm:$0xf]
  %v1352 = vld [vmem:[%s11 + $0xa8] sm:$0xff]
  %v1353 = vld [vmem:[%s11 + $0xb0] sm:$0xff]
  %v1354 = vld [vmem:[%s11 + $0xb8] sm:$0xff]
  %v1355 = vld [vmem:[%s11 + $0xc0] sm:$0xf]
  %v1356 = vld [vmem:[%s11 + $0xc4] sm:$0xff]
  %v1357 = vld [vmem:[%s11 + $0xcc] sm:$0xff]
  %v1358 = vld [vmem:[%s11 + $0xd4] sm:$0xff]
  %v1359 = vld [vmem:[%s11 + $0xdc] sm:$0xf]
  %v1360 = vld [vmem:[%s11 + $0xe0] sm:$0xff]
  %v1361 = vld [vmem:[%s11 + $0xe8] sm:$0xff]
  %v1362 = vld [vmem:[%s11 + $0xf0] sm:$0xff]
  %v1363 = vld [vmem:[%s11 + $0xf8] sm:$0xf]
  %v1364 = vld [vmem:[%s11 + $0xfc] sm:$0xff]
  %v1365 = vld [vmem:[%s11 + $0x104] sm:$0xff]
  %v1366 = vld [vmem:[%s11 + $0x10c] sm:$0xff]
  %v1367 = vld [vmem:[%s11 + $0x114] sm:$0xf]
  %v1368 = vld [vmem:[%s11 + $0x118] sm:$0xff]
  %v1369 = vld [vmem:[%s11 + $0x120] sm:$0xff]
  %v1370 = vld [vmem:[%s11 + $0x128] sm:$0xff]
  %v1371 = vld [vmem:[%s11 + $0x130] sm:$0xf]
  %v1372 = vld [vmem:[%s11 + $0x134] sm:$0xff]
  %v1373 = vld [vmem:[%s11 + $0x13c] sm:$0xff]
  %v1374 = vld [vmem:[%s11 + $0x144] sm:$0xff]
  %v1375 = vld [vmem:[%s11 + $0x14c] sm:$0xf]
  %v1376 = vld [vmem:[%s11 + $0x150] sm:$0xff]
  %v1377 = vld [vmem:[%s11 + $0x158] sm:$0xff]
  %v1378 = vld [vmem:[%s11 + $0x160] sm:$0xff]
  %v1379 = vld [vmem:[%s11 + $0x168] sm:$0xf]
  %v1380 = vld [vmem:[%s11 + $0x16c] sm:$0xff]
  %v1381 = vld [vmem:[%s11 + $0x174] sm:$0xff]
  %v1382 = vld [vmem:[%s11 + $0x17c] sm:$0xff]
  %v1383 = vld [vmem:[%s11 + $0x184] sm:$0xf]
  %v1384 = vld [vmem:[%s11 + $0x188] sm:$0xff]
  %v1385 = vld [vmem:[%s11 + $0x190] sm:$0xff]
  %v1386 = vld [vmem:[%s11 + $0x198] sm:$0xff]
  %v1387 = vld [vmem:[%s11 + $0x1a0] sm:$0xf]
  %v1388 = vld [vmem:[%s11 + $0x1a4] sm:$0xff]
  %v1389 = vld [vmem:[%s11 + $0x1ac] sm:$0xff]
  %v1390 = vld [vmem:[%s11 + $0x1b4] sm:$0xff]
  %v1391 = vld [vmem:[%s11 + $0x1bc] sm:$0xf]
  %v1392 = vld [vmem:[%s11 + $0x1c0] sm:$0xff]
  %v1393 = vld [vmem:[%s11 + $0x1c8] sm:$0xff]
  %v1394 = vld [vmem:[%s11 + $0x1d0] sm:$0xff]
  %v1395 = vld [vmem:[%s11 + $0x1d8] sm:$0xf]
  %v1396 = vld [vmem:[%s11 + $0x1dc] sm:$0xff]
  %v1397 = vld [vmem:[%s11 + $0x1e4] sm:$0xff]
  %v1398 = vld [vmem:[%s11 + $0x1ec] sm:$0xff]
  %v1399 = vld [vmem:[%s11 + $0x1f4] sm:$0xf]
  %v1400 = vld [vmem:[%s11 + $0x1f8] sm:$0xff]
  %v1401 = vld [vmem:[%s11 + $0x200] sm:$0xff]
  %v1402 = vld [vmem:[%s11 + $0x208] sm:$0xff]
  %v1403 = vld [vmem:[%s11 + $0x210] sm:$0xf]
  %v1404 = vld [vmem:[%s11 + $0x214] sm:$0xff]
  %v1405 = vld [vmem:[%s11 + $0x21c] sm:$0xff]
  %v1406 = vld [vmem:[%s11 + $0x224] sm:$0xff]
  %v1407 = vld [vmem:[%s11 + $0x22c] sm:$0xf]
  %v1408 = vld [vmem:[%s11 + $0x230] sm:$0xff]
  %v1409 = vld [vmem:[%s11 + $0x238] sm:$0xff]
  %v1410 = vld [vmem:[%s11 + $0x240] sm:$0xff]
  %v1411 = vld [vmem:[%s11 + $0x248] sm:$0xf]
  %v1412 = vld [vmem:[%s11 + $0x24c] sm:$0xff]
  %v1413 = vld [vmem:[%s11 + $0x254] sm:$0xff]
  %v1414 = vld [vmem:[%s11 + $0x25c] sm:$0xff]
  %v1415 = vld [vmem:[%s11 + $0x264] sm:$0xf]
  %v1416 = vld [vmem:[%s11 + $0x268] sm:$0xff]
  %v1417 = vld [vmem:[%s11 + $0x270] sm:$0xff]
  %v1418 = vld [vmem:[%s11 + $0x278] sm:$0xff]
  %v1419 = vld [vmem:[%s11 + $0x280] sm:$0xf]
  %v1420 = vld [vmem:[%s11 + $0x284] sm:$0xff]
  %v1421 = vld [vmem:[%s11 + $0x28c] sm:$0xff]
  %v1422 = vld [vmem:[%s11 + $0x294] sm:$0xff]
  %v1423 = vld [vmem:[%s11 + $0x29c] sm:$0xf]
  %v1424 = vld [vmem:[%s11 + $0x2a0] sm:$0xff]
  %v1425 = vld [vmem:[%s11 + $0x2a8] sm:$0xff]
  %v1426 = vld [vmem:[%s11 + $0x2b0] sm:$0xff]
  %v1427 = vld [vmem:[%s11 + $0x2b8] sm:$0xf]
  %v1428 = vld [vmem:[%s11 + $0x2bc] sm:$0xff]
  %v1429 = vld [vmem:[%s11 + $0x2c4] sm:$0xff]
  %v1430 = vld [vmem:[%s11 + $0x2cc] sm:$0xff]
  %v1431 = vld [vmem:[%s11 + $0x2d4] sm:$0xf]
  %v1432 = vld [vmem:[%s11 + $0x2d8] sm:$0xff]
  %v1433 = vld [vmem:[%s11 + $0x2e0] sm:$0xff]
  %v1434 = vld [vmem:[%s11 + $0x2e8] sm:$0xff]
  %v1435 = vld [vmem:[%s11 + $0x2f0] sm:$0xf]
  %v1436 = vld [vmem:[%s11 + $0x2f4] sm:$0xff]
  %v1437 = vld [vmem:[%s11 + $0x2fc] sm:$0xff]
  %v1438 = vld [vmem:[%s11 + $0x304] sm:$0xff]
  %v1439 = vld [vmem:[%s11 + $0x30c] sm:$0xf]
  %v1440 = vld [vmem:[%s11 + $0x310] sm:$0xff]
  %v1441 = vld [vmem:[%s11 + $0x318] sm:$0xff]
  %v1442 = vld [vmem:[%s11 + $0x320] sm:$0xff]
  %v1443 = vld [vmem:[%s11 + $0x328] sm:$0xf]
  %v1444 = vld [vmem:[%s11 + $0x32c] sm:$0xff]
  %v1445 = vld [vmem:[%s11 + $0x334] sm:$0xff]
  %v1446 = vld [vmem:[%s11 + $0x33c] sm:$0xff]
  %v1447 = vld [vmem:[%s11 + $0x344] sm:$0xf]
  %v1448 = vld [vmem:[%s11 + $0x348] sm:$0xff]
  %v1449 = vld [vmem:[%s11 + $0x350] sm:$0xff]
  %v1450 = vld [vmem:[%s11 + $0x358] sm:$0xff]
  %v1451 = vld [vmem:[%s11 + $0x360] sm:$0xf]
  %v1452 = vld [vmem:[%s11 + $0x364] sm:$0xff]
  %v1453 = vld [vmem:[%s11 + $0x36c] sm:$0xff]
  %v1454 = vld [vmem:[%s11 + $0x374] sm:$0xff]
  %v1455 = vld [vmem:[%s11 + $0x37c] sm:$0xf]
  %v1456 = vld [vmem:[%s12] sm:$0x7f]
  %v1458 = vlaneseq
  %v1459 = vshrl.u32 %v1458, 7
  %v1460 = vsub.s32 0, %v1459
  %v1461 = vrot.slane %v1456, %v1460
  %v1462 = vlaneseq
  %v1463 = vshrl.u32 %v1462, 7
  %v1464 = vsub.s32 1, %v1463
  %v1465 = vrot.slane %v1456, %v1464
  %v1466 = vlaneseq
  %v1467 = vshrl.u32 %v1466, 7
  %v1468 = vsub.s32 2, %v1467
  %v1469 = vrot.slane %v1456, %v1468
  %v1470 = vlaneseq
  %v1471 = vshrl.u32 %v1470, 7
  %v1472 = vsub.s32 3, %v1471
  %v1473 = vrot.slane %v1456, %v1472
  %v1474 = vlaneseq
  %v1475 = vshrl.u32 %v1474, 7
  %v1476 = vsub.s32 4, %v1475
  %v1477 = vrot.slane %v1456, %v1476
  %v1478 = vlaneseq
  %v1479 = vshrl.u32 %v1478, 7
  %v1480 = vsub.s32 5, %v1479
  %v1481 = vrot.slane %v1456, %v1480
  %v1482 = vlaneseq
  %v1483 = vshrl.u32 %v1482, 7
  %v1484 = vsub.s32 6, %v1483
  %v1485 = vrot.slane %v1456, %v1484
  %v1621 = vunpack.c.l.b16 %v1328
  %v1622 = vunpack.c.h.b16 %v1328
  %v1623 = vunpack.c.l.b16 %v1329
  %v1624 = vunpack.c.h.b16 %v1329
  %v1625 = vunpack.c.l.b16 %v1330
  %v1626 = vunpack.c.h.b16 %v1330
  %v1627 = vunpack.c.l.b16 %v1331
  %v1628 = vunpack.c.l.b16 %v1332
  %v1629 = vunpack.c.h.b16 %v1332
  %v1630 = vunpack.c.l.b16 %v1333
  %v1631 = vunpack.c.h.b16 %v1333
  %v1632 = vunpack.c.l.b16 %v1334
  %v1633 = vunpack.c.h.b16 %v1334
  %v1634 = vunpack.c.l.b16 %v1335
  %v1635 = vunpack.c.l.b16 %v1336
  %v1636 = vunpack.c.h.b16 %v1336
  %v1637 = vunpack.c.l.b16 %v1337
  %v1638 = vunpack.c.h.b16 %v1337
  %v1639 = vunpack.c.l.b16 %v1338
  %v1640 = vunpack.c.h.b16 %v1338
  %v1641 = vunpack.c.l.b16 %v1339
  %v1642 = vunpack.c.l.b16 %v1340
  %v1643 = vunpack.c.h.b16 %v1340
  %v1644 = vunpack.c.l.b16 %v1341
  %v1645 = vunpack.c.h.b16 %v1341
  %v1646 = vunpack.c.l.b16 %v1342
  %v1647 = vunpack.c.h.b16 %v1342
  %v1648 = vunpack.c.l.b16 %v1343
  %v1649 = vunpack.c.l.b16 %v1344
  %v1650 = vunpack.c.h.b16 %v1344
  %v1651 = vunpack.c.l.b16 %v1345
  %v1652 = vunpack.c.h.b16 %v1345
  %v1653 = vunpack.c.l.b16 %v1346
  %v1654 = vunpack.c.h.b16 %v1346
  %v1655 = vunpack.c.l.b16 %v1347
  %v1656 = vunpack.c.l.b16 %v1348
  %v1657 = vunpack.c.h.b16 %v1348
  %v1658 = vunpack.c.l.b16 %v1349
  %v1659 = vunpack.c.h.b16 %v1349
  %v1660 = vunpack.c.l.b16 %v1350
  %v1661 = vunpack.c.h.b16 %v1350
  %v1662 = vunpack.c.l.b16 %v1351
  %v1663 = vunpack.c.l.b16 %v1352
  %v1664 = vunpack.c.h.b16 %v1352
  %v1665 = vunpack.c.l.b16 %v1353
  %v1666 = vunpack.c.h.b16 %v1353
  %v1667 = vunpack.c.l.b16 %v1354
  %v1668 = vunpack.c.h.b16 %v1354
  %v1669 = vunpack.c.l.b16 %v1355
  %v1670 = vunpack.c.l.b16 %v1356
  %v1671 = vunpack.c.h.b16 %v1356
  %v1672 = vunpack.c.l.b16 %v1357
  %v1673 = vunpack.c.h.b16 %v1357
  %v1674 = vunpack.c.l.b16 %v1358
  %v1675 = vunpack.c.h.b16 %v1358
  %v1676 = vunpack.c.l.b16 %v1359
  %v1677 = vunpack.c.l.b16 %v1360
  %v1678 = vunpack.c.h.b16 %v1360
  %v1679 = vunpack.c.l.b16 %v1361
  %v1680 = vunpack.c.h.b16 %v1361
  %v1681 = vunpack.c.l.b16 %v1362
  %v1682 = vunpack.c.h.b16 %v1362
  %v1683 = vunpack.c.l.b16 %v1363
  %v1684 = vunpack.c.l.b16 %v1364
  %v1685 = vunpack.c.h.b16 %v1364
  %v1686 = vunpack.c.l.b16 %v1365
  %v1687 = vunpack.c.h.b16 %v1365
  %v1688 = vunpack.c.l.b16 %v1366
  %v1689 = vunpack.c.h.b16 %v1366
  %v1690 = vunpack.c.l.b16 %v1367
  %v1691 = vunpack.c.l.b16 %v1368
  %v1692 = vunpack.c.h.b16 %v1368
  %v1693 = vunpack.c.l.b16 %v1369
  %v1694 = vunpack.c.h.b16 %v1369
  %v1695 = vunpack.c.l.b16 %v1370
  %v1696 = vunpack.c.h.b16 %v1370
  %v1697 = vunpack.c.l.b16 %v1371
  %v1698 = vunpack.c.l.b16 %v1372
  %v1699 = vunpack.c.h.b16 %v1372
  %v1700 = vunpack.c.l.b16 %v1373
  %v1701 = vunpack.c.h.b16 %v1373
  %v1702 = vunpack.c.l.b16 %v1374
  %v1703 = vunpack.c.h.b16 %v1374
  %v1704 = vunpack.c.l.b16 %v1375
  %v1705 = vunpack.c.l.b16 %v1376
  %v1706 = vunpack.c.h.b16 %v1376
  %v1707 = vunpack.c.l.b16 %v1377
  %v1708 = vunpack.c.h.b16 %v1377
  %v1709 = vunpack.c.l.b16 %v1378
  %v1710 = vunpack.c.h.b16 %v1378
  %v1711 = vunpack.c.l.b16 %v1379
  %v1712 = vunpack.c.l.b16 %v1380
  %v1713 = vunpack.c.h.b16 %v1380
  %v1714 = vunpack.c.l.b16 %v1381
  %v1715 = vunpack.c.h.b16 %v1381
  %v1716 = vunpack.c.l.b16 %v1382
  %v1717 = vunpack.c.h.b16 %v1382
  %v1718 = vunpack.c.l.b16 %v1383
  %v1719 = vunpack.c.l.b16 %v1384
  %v1720 = vunpack.c.h.b16 %v1384
  %v1721 = vunpack.c.l.b16 %v1385
  %v1722 = vunpack.c.h.b16 %v1385
  %v1723 = vunpack.c.l.b16 %v1386
  %v1724 = vunpack.c.h.b16 %v1386
  %v1725 = vunpack.c.l.b16 %v1387
  %v1726 = vunpack.c.l.b16 %v1388
  %v1727 = vunpack.c.h.b16 %v1388
  %v1728 = vunpack.c.l.b16 %v1389
  %v1729 = vunpack.c.h.b16 %v1389
  %v1730 = vunpack.c.l.b16 %v1390
  %v1731 = vunpack.c.h.b16 %v1390
  %v1732 = vunpack.c.l.b16 %v1391
  %v1733 = vunpack.c.l.b16 %v1392
  %v1734 = vunpack.c.h.b16 %v1392
  %v1735 = vunpack.c.l.b16 %v1393
  %v1736 = vunpack.c.h.b16 %v1393
  %v1737 = vunpack.c.l.b16 %v1394
  %v1738 = vunpack.c.h.b16 %v1394
  %v1739 = vunpack.c.l.b16 %v1395
  %v1740 = vunpack.c.l.b16 %v1396
  %v1741 = vunpack.c.h.b16 %v1396
  %v1742 = vunpack.c.l.b16 %v1397
  %v1743 = vunpack.c.h.b16 %v1397
  %v1744 = vunpack.c.l.b16 %v1398
  %v1745 = vunpack.c.h.b16 %v1398
  %v1746 = vunpack.c.l.b16 %v1399
  %v1747 = vunpack.c.l.b16 %v1400
  %v1748 = vunpack.c.h.b16 %v1400
  %v1749 = vunpack.c.l.b16 %v1401
  %v1750 = vunpack.c.h.b16 %v1401
  %v1751 = vunpack.c.l.b16 %v1402
  %v1752 = vunpack.c.h.b16 %v1402
  %v1753 = vunpack.c.l.b16 %v1403
  %v1754 = vunpack.c.l.b16 %v1404
  %v1755 = vunpack.c.h.b16 %v1404
  %v1756 = vunpack.c.l.b16 %v1405
  %v1757 = vunpack.c.h.b16 %v1405
  %v1758 = vunpack.c.l.b16 %v1406
  %v1759 = vunpack.c.h.b16 %v1406
  %v1760 = vunpack.c.l.b16 %v1407
  %v1761 = vunpack.c.l.b16 %v1408
  %v1762 = vunpack.c.h.b16 %v1408
  %v1763 = vunpack.c.l.b16 %v1409
  %v1764 = vunpack.c.h.b16 %v1409
  %v1765 = vunpack.c.l.b16 %v1410
  %v1766 = vunpack.c.h.b16 %v1410
  %v1767 = vunpack.c.l.b16 %v1411
  %v1768 = vunpack.c.l.b16 %v1412
  %v1769 = vunpack.c.h.b16 %v1412
  %v1770 = vunpack.c.l.b16 %v1413
  %v1771 = vunpack.c.h.b16 %v1413
  %v1772 = vunpack.c.l.b16 %v1414
  %v1773 = vunpack.c.h.b16 %v1414
  %v1774 = vunpack.c.l.b16 %v1415
  %v1775 = vunpack.c.l.b16 %v1416
  %v1776 = vunpack.c.h.b16 %v1416
  %v1777 = vunpack.c.l.b16 %v1417
  %v1778 = vunpack.c.h.b16 %v1417
  %v1779 = vunpack.c.l.b16 %v1418
  %v1780 = vunpack.c.h.b16 %v1418
  %v1781 = vunpack.c.l.b16 %v1419
  %v1782 = vunpack.c.l.b16 %v1420
  %v1783 = vunpack.c.h.b16 %v1420
  %v1784 = vunpack.c.l.b16 %v1421
  %v1785 = vunpack.c.h.b16 %v1421
  %v1786 = vunpack.c.l.b16 %v1422
  %v1787 = vunpack.c.h.b16 %v1422
  %v1788 = vunpack.c.l.b16 %v1423
  %v1789 = vunpack.c.l.b16 %v1424
  %v1790 = vunpack.c.h.b16 %v1424
  %v1791 = vunpack.c.l.b16 %v1425
  %v1792 = vunpack.c.h.b16 %v1425
  %v1793 = vunpack.c.l.b16 %v1426
  %v1794 = vunpack.c.h.b16 %v1426
  %v1795 = vunpack.c.l.b16 %v1427
  %v1796 = vunpack.c.l.b16 %v1428
  %v1797 = vunpack.c.h.b16 %v1428
  %v1798 = vunpack.c.l.b16 %v1429
  %v1799 = vunpack.c.h.b16 %v1429
  %v1800 = vunpack.c.l.b16 %v1430
  %v1801 = vunpack.c.h.b16 %v1430
  %v1802 = vunpack.c.l.b16 %v1431
  %v1803 = vunpack.c.l.b16 %v1432
  %v1804 = vunpack.c.h.b16 %v1432
  %v1805 = vunpack.c.l.b16 %v1433
  %v1806 = vunpack.c.h.b16 %v1433
  %v1807 = vunpack.c.l.b16 %v1434
  %v1808 = vunpack.c.h.b16 %v1434
  %v1809 = vunpack.c.l.b16 %v1435
  %v1810 = vunpack.c.l.b16 %v1436
  %v1811 = vunpack.c.h.b16 %v1436
  %v1812 = vunpack.c.l.b16 %v1437
  %v1813 = vunpack.c.h.b16 %v1437
  %v1814 = vunpack.c.l.b16 %v1438
  %v1815 = vunpack.c.h.b16 %v1438
  %v1816 = vunpack.c.l.b16 %v1439
  %v1817 = vunpack.c.l.b16 %v1440
  %v1818 = vunpack.c.h.b16 %v1440
  %v1819 = vunpack.c.l.b16 %v1441
  %v1820 = vunpack.c.h.b16 %v1441
  %v1821 = vunpack.c.l.b16 %v1442
  %v1822 = vunpack.c.h.b16 %v1442
  %v1823 = vunpack.c.l.b16 %v1443
  %v1824 = vunpack.c.l.b16 %v1444
  %v1825 = vunpack.c.h.b16 %v1444
  %v1826 = vunpack.c.l.b16 %v1445
  %v1827 = vunpack.c.h.b16 %v1445
  %v1828 = vunpack.c.l.b16 %v1446
  %v1829 = vunpack.c.h.b16 %v1446
  %v1830 = vunpack.c.l.b16 %v1447
  %v1831 = vunpack.c.l.b16 %v1448
  %v1832 = vunpack.c.h.b16 %v1448
  %v1833 = vunpack.c.l.b16 %v1449
  %v1834 = vunpack.c.h.b16 %v1449
  %v1835 = vunpack.c.l.b16 %v1450
  %v1836 = vunpack.c.h.b16 %v1450
  %v1837 = vunpack.c.l.b16 %v1451
  %v1838 = vunpack.c.l.b16 %v1452
  %v1839 = vunpack.c.h.b16 %v1452
  %v1840 = vunpack.c.l.b16 %v1453
  %v1841 = vunpack.c.h.b16 %v1453
  %v1842 = vunpack.c.l.b16 %v1454
  %v1843 = vunpack.c.h.b16 %v1454
  %v1844 = vunpack.c.l.b16 %v1455
  %v1845 = vpack.c.b16 %v1628, %v1621
  %v1846 = vpack.c.b16 %v1629, %v1622
  %v1847 = vpack.c.b16 %v1630, %v1623
  %v1848 = vpack.c.b16 %v1631, %v1624
  %v1849 = vpack.c.b16 %v1632, %v1625
  %v1850 = vpack.c.b16 %v1633, %v1626
  %v1851 = vpack.c.b16 %v1634, %v1627
  %v1852 = vpack.c.b16 %v1642, %v1635
  %v1853 = vpack.c.b16 %v1643, %v1636
  %v1854 = vpack.c.b16 %v1644, %v1637
  %v1855 = vpack.c.b16 %v1645, %v1638
  %v1856 = vpack.c.b16 %v1646, %v1639
  %v1857 = vpack.c.b16 %v1647, %v1640
  %v1858 = vpack.c.b16 %v1648, %v1641
  %v1859 = vpack.c.b16 %v1656, %v1649
  %v1860 = vpack.c.b16 %v1657, %v1650
  %v1861 = vpack.c.b16 %v1658, %v1651
  %v1862 = vpack.c.b16 %v1659, %v1652
  %v1863 = vpack.c.b16 %v1660, %v1653
  %v1864 = vpack.c.b16 %v1661, %v1654
  %v1865 = vpack.c.b16 %v1662, %v1655
  %v1866 = vpack.c.b16 %v1670, %v1663
  %v1867 = vpack.c.b16 %v1671, %v1664
  %v1868 = vpack.c.b16 %v1672, %v1665
  %v1869 = vpack.c.b16 %v1673, %v1666
  %v1870 = vpack.c.b16 %v1674, %v1667
  %v1871 = vpack.c.b16 %v1675, %v1668
  %v1872 = vpack.c.b16 %v1676, %v1669
  %v1873 = vpack.c.b16 %v1684, %v1677
  %v1874 = vpack.c.b16 %v1685, %v1678
  %v1875 = vpack.c.b16 %v1686, %v1679
  %v1876 = vpack.c.b16 %v1687, %v1680
  %v1877 = vpack.c.b16 %v1688, %v1681
  %v1878 = vpack.c.b16 %v1689, %v1682
  %v1879 = vpack.c.b16 %v1690, %v1683
  %v1880 = vpack.c.b16 %v1698, %v1691
  %v1881 = vpack.c.b16 %v1699, %v1692
  %v1882 = vpack.c.b16 %v1700, %v1693
  %v1883 = vpack.c.b16 %v1701, %v1694
  %v1884 = vpack.c.b16 %v1702, %v1695
  %v1885 = vpack.c.b16 %v1703, %v1696
  %v1886 = vpack.c.b16 %v1704, %v1697
  %v1887 = vpack.c.b16 %v1712, %v1705
  %v1888 = vpack.c.b16 %v1713, %v1706
  %v1889 = vpack.c.b16 %v1714, %v1707
  %v1890 = vpack.c.b16 %v1715, %v1708
  %v1891 = vpack.c.b16 %v1716, %v1709
  %v1892 = vpack.c.b16 %v1717, %v1710
  %v1893 = vpack.c.b16 %v1718, %v1711
  %v1894 = vpack.c.b16 %v1726, %v1719
  %v1895 = vpack.c.b16 %v1727, %v1720
  %v1896 = vpack.c.b16 %v1728, %v1721
  %v1897 = vpack.c.b16 %v1729, %v1722
  %v1898 = vpack.c.b16 %v1730, %v1723
  %v1899 = vpack.c.b16 %v1731, %v1724
  %v1900 = vpack.c.b16 %v1732, %v1725
  %v1901 = vpack.c.b16 %v1740, %v1733
  %v1902 = vpack.c.b16 %v1741, %v1734
  %v1903 = vpack.c.b16 %v1742, %v1735
  %v1904 = vpack.c.b16 %v1743, %v1736
  %v1905 = vpack.c.b16 %v1744, %v1737
  %v1906 = vpack.c.b16 %v1745, %v1738
  %v1907 = vpack.c.b16 %v1746, %v1739
  %v1908 = vpack.c.b16 %v1754, %v1747
  %v1909 = vpack.c.b16 %v1755, %v1748
  %v1910 = vpack.c.b16 %v1756, %v1749
  %v1911 = vpack.c.b16 %v1757, %v1750
  %v1912 = vpack.c.b16 %v1758, %v1751
  %v1913 = vpack.c.b16 %v1759, %v1752
  %v1914 = vpack.c.b16 %v1760, %v1753
  %v1915 = vpack.c.b16 %v1768, %v1761
  %v1916 = vpack.c.b16 %v1769, %v1762
  %v1917 = vpack.c.b16 %v1770, %v1763
  %v1918 = vpack.c.b16 %v1771, %v1764
  %v1919 = vpack.c.b16 %v1772, %v1765
  %v1920 = vpack.c.b16 %v1773, %v1766
  %v1921 = vpack.c.b16 %v1774, %v1767
  %v1922 = vpack.c.b16 %v1782, %v1775
  %v1923 = vpack.c.b16 %v1783, %v1776
  %v1924 = vpack.c.b16 %v1784, %v1777
  %v1925 = vpack.c.b16 %v1785, %v1778
  %v1926 = vpack.c.b16 %v1786, %v1779
  %v1927 = vpack.c.b16 %v1787, %v1780
  %v1928 = vpack.c.b16 %v1788, %v1781
  %v1929 = vpack.c.b16 %v1796, %v1789
  %v1930 = vpack.c.b16 %v1797, %v1790
  %v1931 = vpack.c.b16 %v1798, %v1791
  %v1932 = vpack.c.b16 %v1799, %v1792
  %v1933 = vpack.c.b16 %v1800, %v1793
  %v1934 = vpack.c.b16 %v1801, %v1794
  %v1935 = vpack.c.b16 %v1802, %v1795
  %v1936 = vpack.c.b16 %v1810, %v1803
  %v1937 = vpack.c.b16 %v1811, %v1804
  %v1938 = vpack.c.b16 %v1812, %v1805
  %v1939 = vpack.c.b16 %v1813, %v1806
  %v1940 = vpack.c.b16 %v1814, %v1807
  %v1941 = vpack.c.b16 %v1815, %v1808
  %v1942 = vpack.c.b16 %v1816, %v1809
  %v1943 = vpack.c.b16 %v1824, %v1817
  %v1944 = vpack.c.b16 %v1825, %v1818
  %v1945 = vpack.c.b16 %v1826, %v1819
  %v1946 = vpack.c.b16 %v1827, %v1820
  %v1947 = vpack.c.b16 %v1828, %v1821
  %v1948 = vpack.c.b16 %v1829, %v1822
  %v1949 = vpack.c.b16 %v1830, %v1823
  %v1950 = vpack.c.b16 %v1838, %v1831
  %v1951 = vpack.c.b16 %v1839, %v1832
  %v1952 = vpack.c.b16 %v1840, %v1833
  %v1953 = vpack.c.b16 %v1841, %v1834
  %v1954 = vpack.c.b16 %v1842, %v1835
  %v1955 = vpack.c.b16 %v1843, %v1836
  %v1956 = vpack.c.b16 %v1844, %v1837
  %2069 = vmatprep.subr.bf16.mxu0 %v1846
  %2070 = vmatpush1.bf16.msra.mxu0 %v1845
  %2071 = vmatprep.subr.bf16.mxu0 %v1853
  %2072 = vmatpush1.bf16.msra.mxu0 %v1852
  %2073 = vmatprep.subr.bf16.mxu0 %v1860
  %2074 = vmatpush1.bf16.msra.mxu0 %v1859
  %2075 = vmatprep.subr.bf16.mxu0 %v1867
  %2076 = vmatpush1.bf16.msra.mxu0 %v1866
  %2077 = vmatprep.subr.bf16.mxu0 %v1874
  %2078 = vmatpush1.bf16.msra.mxu0 %v1873
  %2079 = vmatprep.subr.bf16.mxu0 %v1881
  %2080 = vmatpush1.bf16.msra.mxu0 %v1880
  %2081 = vmatprep.subr.bf16.mxu0 %v1888
  %2082 = vmatpush1.bf16.msra.mxu0 %v1887
  %2083 = vmatprep.subr.bf16.mxu0 %v1895
  %2084 = vmatpush1.bf16.msra.mxu0 %v1894
  %2085 = vmatprep.subr.bf16.mxu0 %v1902
  %2086 = vmatpush1.bf16.msra.mxu0 %v1901
  %2087 = vmatprep.subr.bf16.mxu0 %v1909
  %2088 = vmatpush1.bf16.msra.mxu0 %v1908
  %2089 = vmatprep.subr.bf16.mxu0 %v1916
  %2090 = vmatpush1.bf16.msra.mxu0 %v1915
  %2091 = vmatprep.subr.bf16.mxu0 %v1923
  %2092 = vmatpush1.bf16.msra.mxu0 %v1922
  %2093 = vmatprep.subr.bf16.mxu0 %v1930
  %2094 = vmatpush1.bf16.msra.mxu0 %v1929
  %2095 = vmatprep.subr.bf16.mxu0 %v1937
  %2096 = vmatpush1.bf16.msra.mxu0 %v1936
  %2097 = vmatprep.subr.bf16.mxu0 %v1944
  %2098 = vmatpush1.bf16.msra.mxu0 %v1943
  %2099 = vmatprep.subr.bf16.mxu0 %v1951
  %2100 = vmatpush1.bf16.msra.mxu0 %v1950
  %2101 = vmatprep.mubr.bf16.mxu0 %v1327
  %2102 = vmatmul.mubr.bf16.gmra.mrb[0].mxu0 %v1326
  %v2103 = vpop.f32.mrb[0].mxu0
  %v2104 = vadd.f32 %v1461, %v2103
  %v2105 = vpop.f32.mrb[0].mxu0
  %v2106 = vadd.f32 %v1465, %v2105
  %v2107 = vpop.f32.mrb[0].mxu0
  %v2108 = vpop.f32.mrb[0].mxu0
  %2109 = vdwg.mxu0
  %2110 = vmatprep.subr.bf16.mxu0 %v1848
  %2111 = vmatpush1.bf16.msra.mxu0 %v1847
  %2112 = vmatprep.subr.bf16.mxu0 %v1855
  %2113 = vmatpush1.bf16.msra.mxu0 %v1854
  %2114 = vmatprep.subr.bf16.mxu0 %v1862
  %2115 = vmatpush1.bf16.msra.mxu0 %v1861
  %2116 = vmatprep.subr.bf16.mxu0 %v1869
  %2117 = vmatpush1.bf16.msra.mxu0 %v1868
  %2118 = vmatprep.subr.bf16.mxu0 %v1876
  %2119 = vmatpush1.bf16.msra.mxu0 %v1875
  %2120 = vmatprep.subr.bf16.mxu0 %v1883
  %2121 = vmatpush1.bf16.msra.mxu0 %v1882
  %2122 = vmatprep.subr.bf16.mxu0 %v1890
  %2123 = vmatpush1.bf16.msra.mxu0 %v1889
  %2124 = vmatprep.subr.bf16.mxu0 %v1897
  %2125 = vmatpush1.bf16.msra.mxu0 %v1896
  %2126 = vmatprep.subr.bf16.mxu0 %v1904
  %2127 = vmatpush1.bf16.msra.mxu0 %v1903
  %2128 = vmatprep.subr.bf16.mxu0 %v1911
  %2129 = vmatpush1.bf16.msra.mxu0 %v1910
  %2130 = vmatprep.subr.bf16.mxu0 %v1918
  %2131 = vmatpush1.bf16.msra.mxu0 %v1917
  %2132 = vmatprep.subr.bf16.mxu0 %v1925
  %2133 = vmatpush1.bf16.msra.mxu0 %v1924
  %2134 = vmatprep.subr.bf16.mxu0 %v1932
  %2135 = vmatpush1.bf16.msra.mxu0 %v1931
  %2136 = vmatprep.subr.bf16.mxu0 %v1939
  %2137 = vmatpush1.bf16.msra.mxu0 %v1938
  %2138 = vmatprep.subr.bf16.mxu0 %v1946
  %2139 = vmatpush1.bf16.msra.mxu0 %v1945
  %2140 = vmatprep.subr.bf16.mxu0 %v1953
  %2141 = vmatpush1.bf16.msra.mxu0 %v1952
  %2142 = vmatprep.mubr.bf16.mxu0 %v1327
  %2143 = vmatmul.mubr.bf16.gmra.mrb[0].mxu0 %v1326
  %v2144 = vpop.f32.mrb[0].mxu0
  %v2145 = vadd.f32 %v1469, %v2144
  %v2146 = vpop.f32.mrb[0].mxu0
  %v2147 = vadd.f32 %v1473, %v2146
  %v2148 = vpop.f32.mrb[0].mxu0
  %v2149 = vpop.f32.mrb[0].mxu0
  %2150 = vdwg.mxu0
  %2151 = vmatprep.subr.bf16.mxu0 %v1850
  %2152 = vmatpush1.bf16.msra.mxu0 %v1849
  %2153 = vmatprep.subr.bf16.mxu0 %v1857
  %2154 = vmatpush1.bf16.msra.mxu0 %v1856
  %2155 = vmatprep.subr.bf16.mxu0 %v1864
  %2156 = vmatpush1.bf16.msra.mxu0 %v1863
  %2157 = vmatprep.subr.bf16.mxu0 %v1871
  %2158 = vmatpush1.bf16.msra.mxu0 %v1870
  %2159 = vmatprep.subr.bf16.mxu0 %v1878
  %2160 = vmatpush1.bf16.msra.mxu0 %v1877
  %2161 = vmatprep.subr.bf16.mxu0 %v1885
  %2162 = vmatpush1.bf16.msra.mxu0 %v1884
  %2163 = vmatprep.subr.bf16.mxu0 %v1892
  %2164 = vmatpush1.bf16.msra.mxu0 %v1891
  %2165 = vmatprep.subr.bf16.mxu0 %v1899
  %2166 = vmatpush1.bf16.msra.mxu0 %v1898
  %2167 = vmatprep.subr.bf16.mxu0 %v1906
  %2168 = vmatpush1.bf16.msra.mxu0 %v1905
  %2169 = vmatprep.subr.bf16.mxu0 %v1913
  %2170 = vmatpush1.bf16.msra.mxu0 %v1912
  %2171 = vmatprep.subr.bf16.mxu0 %v1920
  %2172 = vmatpush1.bf16.msra.mxu0 %v1919
  %2173 = vmatprep.subr.bf16.mxu0 %v1927
  %2174 = vmatpush1.bf16.msra.mxu0 %v1926
  %2175 = vmatprep.subr.bf16.mxu0 %v1934
  %2176 = vmatpush1.bf16.msra.mxu0 %v1933
  %2177 = vmatprep.subr.bf16.mxu0 %v1941
  %2178 = vmatpush1.bf16.msra.mxu0 %v1940
  %2179 = vmatprep.subr.bf16.mxu0 %v1948
  %2180 = vmatpush1.bf16.msra.mxu0 %v1947
  %2181 = vmatprep.subr.bf16.mxu0 %v1955
  %2182 = vmatpush1.bf16.msra.mxu0 %v1954
  %2183 = vmatprep.mubr.bf16.mxu0 %v1327
  %2184 = vmatmul.mubr.bf16.gmra.mrb[0].mxu0 %v1326
  %v2185 = vpop.f32.mrb[0].mxu0
  %v2186 = vadd.f32 %v1477, %v2185
  %v2187 = vpop.f32.mrb[0].mxu0
  %v2188 = vadd.f32 %v1481, %v2187
  %v2189 = vpop.f32.mrb[0].mxu0
  %v2190 = vpop.f32.mrb[0].mxu0
  %2191 = vdwg.mxu0
  %2192 = vmatprep.subr.bf16.mxu0 0
  %2193 = vmatpush1.bf16.msra.mxu0 %v1851
  %2194 = vmatprep.subr.bf16.mxu0 0
  %2195 = vmatpush1.bf16.msra.mxu0 %v1858
  %2196 = vmatprep.subr.bf16.mxu0 0
  %2197 = vmatpush1.bf16.msra.mxu0 %v1865
  %2198 = vmatprep.subr.bf16.mxu0 0
  %2199 = vmatpush1.bf16.msra.mxu0 %v1872
  %2200 = vmatprep.subr.bf16.mxu0 0
  %2201 = vmatpush1.bf16.msra.mxu0 %v1879
  %2202 = vmatprep.subr.bf16.mxu0 0
  %2203 = vmatpush1.bf16.msra.mxu0 %v1886
  %2204 = vmatprep.subr.bf16.mxu0 0
  %2205 = vmatpush1.bf16.msra.mxu0 %v1893
  %2206 = vmatprep.subr.bf16.mxu0 0
  %2207 = vmatpush1.bf16.msra.mxu0 %v1900
  %2208 = vmatprep.subr.bf16.mxu0 0
  %2209 = vmatpush1.bf16.msra.mxu0 %v1907
  %2210 = vmatprep.subr.bf16.mxu0 0
  %2211 = vmatpush1.bf16.msra.mxu0 %v1914
  %2212 = vmatprep.subr.bf16.mxu0 0
  %2213 = vmatpush1.bf16.msra.mxu0 %v1921
  %2214 = vmatprep.subr.bf16.mxu0 0
  %2215 = vmatpush1.bf16.msra.mxu0 %v1928
  %2216 = vmatprep.subr.bf16.mxu0 0
  %2217 = vmatpush1.bf16.msra.mxu0 %v1935
  %2218 = vmatprep.subr.bf16.mxu0 0
  %2219 = vmatpush1.bf16.msra.mxu0 %v1942
  %2220 = vmatprep.subr.bf16.mxu0 0
  %2221 = vmatpush1.bf16.msra.mxu0 %v1949
  %2222 = vmatprep.subr.bf16.mxu0 0
  %2223 = vmatpush1.bf16.msra.mxu0 %v1956
  %2224 = vmatprep.mubr.bf16.mxu0 %v1327
  %2225 = vmatmul.mubr.bf16.gmra.mrb[0].mxu0 %v1326
  %v2226 = vpop.f32.mrb[0].mxu0
  %v2227 = vadd.f32 %v1485, %v2226
  %v2228 = vpop.f32.mrb[0].mxu0
  %v2229 = vpop.f32.mrb[0].mxu0
  %v2230 = vpop.f32.mrb[0].mxu0
  %2231 = vdwg.mxu0
  %v2232 = vxor.u32 %v2104, 2147483648
  %v2233 = vxor.u32 %v2106, 2147483648
  %v2234 = vxor.u32 %v2145, 2147483648
  %v2235 = vxor.u32 %v2147, 2147483648
  %v2236 = vxor.u32 %v2186, 2147483648
  %v2237 = vxor.u32 %v2188, 2147483648
  %v2238 = vxor.u32 %v2227, 2147483648
  %v2239 = vmul.f32 %v2232, 1.442695
  %v2240 = vpow.pop %v2239
  %v2241 = vmul.f32 %v2233, 1.442695
  %v2242 = vpow.pop %v2241
  %v2243 = vmul.f32 %v2234, 1.442695
  %v2244 = vpow.pop %v2243
  %v2245 = vmul.f32 %v2235, 1.442695
  %v2246 = vpow.pop %v2245
  %v2247 = vmul.f32 %v2236, 1.442695
  %v2248 = vpow.pop %v2247
  %v2249 = vmul.f32 %v2237, 1.442695
  %v2250 = vpow.pop %v2249
  %v2251 = vmul.f32 %v2238, 1.442695
  %v2252 = vpow.pop %v2251
  %v2253 = vadd.f32 %v2240, 1.0
  %v2254 = vadd.f32 %v2242, 1.0
  %v2255 = vadd.f32 %v2244, 1.0
  %v2256 = vadd.f32 %v2246, 1.0
  %v2257 = vadd.f32 %v2248, 1.0
  %v2258 = vadd.f32 %v2250, 1.0
  %v2259 = vadd.f32 %v2252, 1.0
  %v2260 = vrcp.pop %v2253
  %v2261 = vmul.f32 1.0, %v2260
  %v2262 = vrcp.pop %v2254
  %v2263 = vmul.f32 1.0, %v2262
  %v2264 = vrcp.pop %v2255
  %v2265 = vmul.f32 1.0, %v2264
  %v2266 = vrcp.pop %v2256
  %v2267 = vmul.f32 1.0, %v2266
  %v2268 = vrcp.pop %v2257
  %v2269 = vmul.f32 1.0, %v2268
  %v2270 = vrcp.pop %v2258
  %v2271 = vmul.f32 1.0, %v2270
  %v2272 = vrcp.pop %v2259
  %v2273 = vmul.f32 1.0, %v2272
  %2274 = vst [vmem:[%s13] sm:$0xff] %v2261
  %2275 = vst [vmem:[%s13 + $0x8] sm:$0xff] %v2263
  %2276 = vst [vmem:[%s13 + $0x10] sm:$0xff] %v2265
  %2277 = vst [vmem:[%s13 + $0x18] sm:$0xff] %v2267
  %2278 = vst [vmem:[%s13 + $0x20] sm:$0xff] %v2269
  %2279 = vst [vmem:[%s13 + $0x28] sm:$0xff] %v2271
  %2280 = vst.msk [vmem:[%s13 + $0x30] sm:$0xff] %vm673, %v2273
  // Predicated region
  $region54: #{autoencoder_forward.1} parent=0 // pred_check
    _
  $region55: #{autoencoder_forward.1} parent=0 // pred_check_branch
    %2282 = sbr.rel (0) target = $region57
  $region56: #{autoencoder_forward.1} parent=0 // pred_region
    _
  $region57: #{autoencoder_forward.1} parent=0 // pred_fallthru
    _
  // Predicated region
  $region58: #{autoencoder_forward.1} parent=0 // pred_check
    _
  $region59: #{autoencoder_forward.1} parent=0 // pred_check_branch
    %2284 = sbr.rel (0) target = $region61
  $region60: #{autoencoder_forward.1} parent=0 // pred_region
    _
  $region61: #{autoencoder_forward.1} parent=0 // pred_fallthru
    _

</llo_original>
